<compile_context>
chip_gen: v5e
topology: v5e:2x2
jax: 0.10.0
libtpu: 0.0.40
codegen_flags: <defaults>
</compile_context>

<pallas_src>
import functools

import jax
import jax.numpy as jnp
from jax import lax
from jax.experimental import pallas as pl
from jax.experimental.pallas import tpu as pltpu

# hexagdly offset-column convention: odd-indexed columns sit half a cell LOWER than
# even-indexed ones.  Flip if your data uses the opposite column offset.
ODD_COLUMNS_ARE_LOWER = True

LANE = 128  # TPU lane width; channel axis padded to a multiple of this.


def _round_up(x, m):
    return (x + m - 1) // m * m


def _hexblock_kernel(xp_ref, w_ref, b_ref, o_ref, *, residual, odd_lower):
    """Fused hex-conv(k=1) + bias (+ residual) + ReLU for a tile of Bt images.

    xp_ref : [Bt, H+2, Wp, Cp] bf16 zero-padded input; image at rows/cols [1..H]/[1..W]
    w_ref  : [7*Cp, Cp]        bf16 fused tap weights ([in, out]); tap order:
                               centre, up, down, left-up, left-down, right-up, right-down
    b_ref  : [1, Cp]           f32 bias (zero in padded channels)
    o_ref  : [Bt, H, W, Cp]    output
    """
    Bt, H, W, Cp = o_ref.shape
    M = Bt * H * W

    # The only sublane-shifting reads: one slab per column offset (3 instead of 11).
    slab_l = xp_ref[:, :H + 2, 0:W, :]        # column c-1
    slab_c = xp_ref[:, :H + 2, 1:W + 1, :]    # column c
    slab_r = xp_ref[:, :H + 2, 2:W + 2, :]    # column c+1

    def rows(slab, r0):                       # row slice: offset-only, no relayout
        return slab[:, r0:r0 + H]

    # Output-column parity mask, built once at (1,1,W,1) and broadcast in the selects.
    col = lax.broadcasted_iota(jnp.int32, (1, 1, W, 1), 2)
    lower = (col % 2) == (1 if odd_lower else 0)

    ctr = rows(slab_c, 1)                                       # centre tap (bf16)
    taps = (
        ctr,                                                    # centre      (r,   c)
        rows(slab_c, 0),                                        # up          (r-1, c)
        rows(slab_c, 2),                                        # down        (r+1, c)
        jnp.where(lower, rows(slab_l, 1), rows(slab_l, 0)),     # left,  upper (c-1)
        jnp.where(lower, rows(slab_l, 2), rows(slab_l, 1)),     # left,  lower (c-1)
        jnp.where(lower, rows(slab_r, 1), rows(slab_r, 0)),     # right, upper (c+1)
        jnp.where(lower, rows(slab_r, 2), rows(slab_r, 1)),     # right, lower (c+1)
    )

    # Single K = 7*Cp MXU matmul: bf16 operands, f32 accumulation.
    lhs = jnp.concatenate([t.reshape(M, Cp) for t in taps], axis=1)   # [M, 7*Cp]
    acc = jnp.dot(lhs, w_ref[...], preferred_element_type=jnp.float32)

    acc = acc + b_ref[...]                                      # bias (lane-dense)
    if residual:
        acc = acc + ctr.reshape(M, Cp).astype(jnp.float32)      # residual, f32 add
    o_ref[...] = jnp.maximum(acc, 0.0).reshape(Bt, H, W, Cp).astype(o_ref.dtype)


def _pick_batch_tile(batch, bytes_per_image, *, budget_bytes=12 << 20):
    """Largest Bt dividing `batch` that (a) keeps >=2 grid steps when batch >= 2
    (so the 'parallel' axis still shards across v7x's two TensorCores) and
    (b) keeps the double-buffered in/out blocks inside a conservative VMEM budget."""
    best = 1
    for bt in range(1, batch + 1):
        if batch % bt:
            continue
        if batch >= 2 and batch // bt < 2:
            continue
        if bt * bytes_per_image > budget_bytes:
            continue
        best = bt
    return best


def hexblock_forward(x_nchw, kernel0, kernel1, bias, *, residual=True,
                     out_dtype=jnp.float32):
    """Pallas TPU equivalent of HexBlock.forward (NCHW in, NCHW out)."""
    B, C, H, W = x_nchw.shape
    c_out = kernel0.shape[0]
    if residual and c_out != C:
        raise ValueError("residual add requires in_channels == out_channels")

    Cp = _round_up(max(C, c_out), LANE)   # lane-dense channel padding
    Hp = H + 2                            # 1-cell zero halo (row axis: no alignment req.)
    Wp = _round_up(W + 2, 8)              # halo + sublane alignment

    # Layout glue: NCHW f32 -> padded NHWC bf16 (half the DMA bytes of the f32 version).
    # TODO(synk): when HexBlocks are stacked, keep activations in this padded NHWC/Cp
    # bf16 layout between blocks instead of round-tripping through NCHW each time.
    x_nhwc = jnp.transpose(x_nchw, (0, 2, 3, 1)).astype(jnp.bfloat16)
    xp = jnp.zeros((B, Hp, Wp, Cp), jnp.bfloat16)
    xp = xp.at[:, 1:H + 1, 1:W + 1, :C].set(x_nhwc)

    # Fused [7*Cp, Cp] bf16 tap weights, stored [in, out] (hexagdly weight transposed).
    tap_weights = (
        kernel0[:, :, 1, 0],   # centre
        kernel0[:, :, 0, 0],   # up
        kernel0[:, :, 2, 0],   # down
        kernel1[:, :, 0, 0],   # left,  upper
        kernel1[:, :, 1, 0],   # left,  lower
        kernel1[:, :, 0, 1],   # right, upper
        kernel1[:, :, 1, 1],   # right, lower
    )
    wcat = jnp.zeros((7 * Cp, Cp), jnp.float32)
    for t, wt in enumerate(tap_weights):
        wcat = wcat.at[t * Cp:t * Cp + C, :c_out].set(wt.T)
    wcat = wcat.astype(jnp.bfloat16)
    bpad = jnp.zeros((1, Cp), jnp.float32).at[0, :c_out].set(bias)

    out_itemsize = jnp.dtype(out_dtype).itemsize
    bytes_per_image = Hp * Wp * Cp * 2 + H * W * Cp * out_itemsize
    Bt = _pick_batch_tile(B, bytes_per_image)

    kernel = functools.partial(_hexblock_kernel, residual=residual,
                               odd_lower=ODD_COLUMNS_ARE_LOWER)
    out = pl.pallas_call(
        kernel,
        out_shape=jax.ShapeDtypeStruct((B, H, W, Cp), out_dtype),
        grid=(B // Bt,),
        in_specs=[
            pl.BlockSpec((Bt, Hp, Wp, Cp), lambda b: (b, 0, 0, 0)),  # activation tiles
            pl.BlockSpec((7 * Cp, Cp), lambda b: (0, 0)),            # weights: VMEM-resident
            pl.BlockSpec((1, Cp), lambda b: (0, 0)),                 # bias:    VMEM-resident
        ],
        out_specs=pl.BlockSpec((Bt, H, W, Cp), lambda b: (b, 0, 0, 0)),
        compiler_params=pltpu.CompilerParams(
            dimension_semantics=("parallel",),   # batch axis shards over TensorCores
            vmem_limit_bytes=32 << 20,           # blocks capped at ~12 MiB -> fits all gens
        ),
    )(xp, wcat, bpad)

    # Drop channel padding, back to NCHW (PyTorch convention).
    return jnp.transpose(out[..., :c_out], (0, 3, 1, 2))


def hexblock_reference(x_nchw, kernel0, kernel1, bias, *, residual=True):
    """Pure-JAX reference with the same bf16-stored-activation / f32-accumulate math."""
    B, C, H, W = x_nchw.shape
    c_out = kernel0.shape[0]
    xb = x_nchw.astype(jnp.bfloat16)              # activations quantized once, as in kernel
    xpad = jnp.pad(xb, ((0, 0), (0, 0), (1, 1), (1, 1)))
    lower = ((jnp.arange(W) % 2) == (1 if ODD_COLUMNS_ARE_LOWER else 0)).reshape(1, 1, 1, W)

    def sl(dr, dc):
        return xpad[:, :, 1 + dr:1 + dr + H, 1 + dc:1 + dc + W]

    taps = (
        (kernel0[:, :, 1, 0], sl(0, 0)),
        (kernel0[:, :, 0, 0], sl(-1, 0)),
        (kernel0[:, :, 2, 0], sl(1, 0)),
        (kernel1[:, :, 0, 0], jnp.where(lower, sl(0, -1), sl(-1, -1))),
        (kernel1[:, :, 1, 0], jnp.where(lower, sl(1, -1), sl(0, -1))),
        (kernel1[:, :, 0, 1], jnp.where(lower, sl(0, 1), sl(-1, 1))),
        (kernel1[:, :, 1, 1], jnp.where(lower, sl(1, 1), sl(0, 1))),
    )
    y = jnp.zeros((B, c_out, H, W), jnp.float32)
    for w_t, tap in taps:
        y = y + jnp.einsum("oi,bihw->bohw",
                           w_t.astype(jnp.bfloat16), tap,
                           preferred_element_type=jnp.float32)
    y = y + bias.reshape(1, -1, 1, 1)
    if residual:
        y = y + xb.astype(jnp.float32)
    return jnp.maximum(y, 0.0)


def init_params(key, c_in, c_out):
    """hexagdly.Conv2d-style params: kernel0 [Co,Ci,3,1], kernel1 [Co,Ci,2,2], bias [Co]."""
    k0k, k1k, bk = jax.random.split(key, 3)
    scale = 1.0 / jnp.sqrt(7.0 * c_in)
    kernel0 = scale * jax.random.normal(k0k, (c_out, c_in, 3, 1), jnp.float32)
    kernel1 = scale * jax.random.normal(k1k, (c_out, c_in, 2, 2), jnp.float32)
    bias = 0.01 * jax.random.normal(bk, (c_out,), jnp.float32)
    return kernel0, kernel1, bias


if __name__ == "__main__":
    key = jax.random.PRNGKey(0)
    kx, kp = jax.random.split(key)

    B, C, H, W = 2, 32, 16, 16   # residual=True => in_channels == out_channels
    x = jax.random.normal(kx, (B, C, H, W), jnp.float32)
    kernel0, kernel1, bias = init_params(kp, C, C)

    out = hexblock_forward(x, kernel0, kernel1, bias)
    jax.block_until_ready(out)

    assert out.shape == (B, C, H, W)

    ref = hexblock_reference(x, kernel0, kernel1, bias)
    max_err = float(jnp.max(jnp.abs(out.astype(jnp.float32) - ref)))
    assert max_err < 1e-3, f"kernel/reference mismatch: {max_err}"

    print("KERNEL_OK")
</pallas_src>

<mosaic_0001>
module attributes {stable_mosaic.version = 11 : i64} {
  func.func @_hexblock_kernel(%arg0: i32, %arg1: memref<1x18x24x128xbf16, #tpu.memory_space<vmem>>, %arg2: memref<896x128xbf16, #tpu.memory_space<vmem>>, %arg3: memref<1x128xf32, #tpu.memory_space<vmem>>, %arg4: memref<1x16x16x128xf32, #tpu.memory_space<vmem>>) attributes {dimension_semantics = [#tpu.dimension_semantics<parallel>], iteration_bounds = array<i64: 2>, scalar_prefetch = 0 : i64, scratch_operands = 0 : i64, tpu.core_type = #tpu.core_type<tc>, window_params = [{transform_indices = @transform_0, window_bounds = array<i64: 1, 18, 24, 128>}, {pipeline_mode = #tpu.pipeline_mode<synchronous>, transform_indices = @transform_1, window_bounds = array<i64: 896, 128>}, {pipeline_mode = #tpu.pipeline_mode<synchronous>, transform_indices = @transform_2, window_bounds = array<i64: 1, 128>}, {transform_indices = @transform_3, window_bounds = array<i64: 1, 16, 16, 128>}]} {
    %c0 = arith.constant 0 : index
    %c0_0 = arith.constant 0 : index
    %c0_1 = arith.constant 0 : index
    %c0_2 = arith.constant 0 : index
    %0 = vector.load %arg1[%c0, %c0_0, %c0_1, %c0_2] : memref<1x18x24x128xbf16, #tpu.memory_space<vmem>>, vector<1x18x16x128xbf16>
    %c0_3 = arith.constant 0 : index
    %c0_4 = arith.constant 0 : index
    %c1 = arith.constant 1 : index
    %c0_5 = arith.constant 0 : index
    %1 = vector.load %arg1[%c0_3, %c0_4, %c1, %c0_5] : memref<1x18x24x128xbf16, #tpu.memory_space<vmem>>, vector<1x18x16x128xbf16>
    %c0_6 = arith.constant 0 : index
    %c0_7 = arith.constant 0 : index
    %c2 = arith.constant 2 : index
    %c0_8 = arith.constant 0 : index
    %2 = vector.load %arg1[%c0_6, %c0_7, %c2, %c0_8] : memref<1x18x24x128xbf16, #tpu.memory_space<vmem>>, vector<1x18x16x128xbf16>
    %3 = tpu.iota {dimensions = array<i32: 2>} : vector<1x1x16x1xi32>
    %c2_i32 = arith.constant 2 : i32
    %c0_i32 = arith.constant 0 : i32
    %4 = arith.cmpi eq, %c2_i32, %c0_i32 : i32
    %c1_i32 = arith.constant 1 : i32
    %5 = arith.select %4, %c1_i32, %c2_i32 : i32
    %6 = vector.broadcast %5 : i32 to vector<1x1x16x1xi32>
    %7 = arith.remsi %3, %6 : vector<1x1x16x1xi32>
    %c0_i32_9 = arith.constant 0 : i32
    %8 = vector.broadcast %c0_i32_9 : i32 to vector<1x1x16x1xi32>
    %9 = arith.cmpi ne, %7, %8 : vector<1x1x16x1xi32>
    %c0_i32_10 = arith.constant 0 : i32
    %10 = vector.broadcast %c0_i32_10 : i32 to vector<1x1x16x1xi32>
    %11 = arith.cmpi slt, %7, %10 : vector<1x1x16x1xi32>
    %c0_i32_11 = arith.constant 0 : i32
    %12 = arith.cmpi slt, %5, %c0_i32_11 : i32
    %13 = vector.broadcast %12 : i1 to vector<1x1x16x1xi1>
    %14 = vector.broadcast %13 : vector<1x1x16x1xi1> to vector<1x1x16x1xi1>
    %15 = arith.xori %11, %14 : vector<1x1x16x1xi1>
    %16 = arith.andi %15, %9 : vector<1x1x16x1xi1>
    %17 = vector.broadcast %5 : i32 to vector<1x1x16x1xi32>
    %18 = arith.addi %7, %17 : vector<1x1x16x1xi32>
    %19 = arith.select %16, %18, %7 : vector<1x1x16x1xi1>, vector<1x1x16x1xi32>
    %c1_i32_12 = arith.constant 1 : i32
    %20 = vector.broadcast %c1_i32_12 : i32 to vector<1x1x16x1xi32>
    %21 = arith.cmpi eq, %19, %20 : vector<1x1x16x1xi32>
    %22 = vector.extract_strided_slice %1 {offsets = [0, 1, 0, 0], sizes = [1, 16, 16, 128], strides = [1, 1, 1, 1]} : vector<1x18x16x128xbf16> to vector<1x16x16x128xbf16>
    %23 = vector.extract_strided_slice %1 {offsets = [0, 0, 0, 0], sizes = [1, 16, 16, 128], strides = [1, 1, 1, 1]} : vector<1x18x16x128xbf16> to vector<1x16x16x128xbf16>
    %24 = vector.extract_strided_slice %1 {offsets = [0, 2, 0, 0], sizes = [1, 16, 16, 128], strides = [1, 1, 1, 1]} : vector<1x18x16x128xbf16> to vector<1x16x16x128xbf16>
    %25 = vector.extract_strided_slice %0 {offsets = [0, 1, 0, 0], sizes = [1, 16, 16, 128], strides = [1, 1, 1, 1]} : vector<1x18x16x128xbf16> to vector<1x16x16x128xbf16>
    %26 = vector.extract_strided_slice %0 {offsets = [0, 0, 0, 0], sizes = [1, 16, 16, 128], strides = [1, 1, 1, 1]} : vector<1x18x16x128xbf16> to vector<1x16x16x128xbf16>
    %27 = vector.shape_cast %21 : vector<1x1x16x1xi1> to vector<1x1x16x1xi1>
    %28 = vector.broadcast %27 : vector<1x1x16x1xi1> to vector<1x16x16x128xi1>
    %29 = arith.select %28, %25, %26 : vector<1x16x16x128xi1>, vector<1x16x16x128xbf16>
    %30 = vector.extract_strided_slice %0 {offsets = [0, 2, 0, 0], sizes = [1, 16, 16, 128], strides = [1, 1, 1, 1]} : vector<1x18x16x128xbf16> to vector<1x16x16x128xbf16>
    %31 = vector.extract_strided_slice %0 {offsets = [0, 1, 0, 0], sizes = [1, 16, 16, 128], strides = [1, 1, 1, 1]} : vector<1x18x16x128xbf16> to vector<1x16x16x128xbf16>
    %32 = vector.shape_cast %21 : vector<1x1x16x1xi1> to vector<1x1x16x1xi1>
    %33 = vector.broadcast %32 : vector<1x1x16x1xi1> to vector<1x16x16x128xi1>
    %34 = arith.select %33, %30, %31 : vector<1x16x16x128xi1>, vector<1x16x16x128xbf16>
    %35 = vector.extract_strided_slice %2 {offsets = [0, 1, 0, 0], sizes = [1, 16, 16, 128], strides = [1, 1, 1, 1]} : vector<1x18x16x128xbf16> to vector<1x16x16x128xbf16>
    %36 = vector.extract_strided_slice %2 {offsets = [0, 0, 0, 0], sizes = [1, 16, 16, 128], strides = [1, 1, 1, 1]} : vector<1x18x16x128xbf16> to vector<1x16x16x128xbf16>
    %37 = vector.shape_cast %21 : vector<1x1x16x1xi1> to vector<1x1x16x1xi1>
    %38 = vector.broadcast %37 : vector<1x1x16x1xi1> to vector<1x16x16x128xi1>
    %39 = arith.select %38, %35, %36 : vector<1x16x16x128xi1>, vector<1x16x16x128xbf16>
    %40 = vector.extract_strided_slice %2 {offsets = [0, 2, 0, 0], sizes = [1, 16, 16, 128], strides = [1, 1, 1, 1]} : vector<1x18x16x128xbf16> to vector<1x16x16x128xbf16>
    %41 = vector.extract_strided_slice %2 {offsets = [0, 1, 0, 0], sizes = [1, 16, 16, 128], strides = [1, 1, 1, 1]} : vector<1x18x16x128xbf16> to vector<1x16x16x128xbf16>
    %42 = vector.shape_cast %21 : vector<1x1x16x1xi1> to vector<1x1x16x1xi1>
    %43 = vector.broadcast %42 : vector<1x1x16x1xi1> to vector<1x16x16x128xi1>
    %44 = arith.select %43, %40, %41 : vector<1x16x16x128xi1>, vector<1x16x16x128xbf16>
    %45 = vector.shape_cast %22 : vector<1x16x16x128xbf16> to vector<256x128xbf16>
    %46 = vector.shape_cast %23 : vector<1x16x16x128xbf16> to vector<256x128xbf16>
    %47 = vector.shape_cast %24 : vector<1x16x16x128xbf16> to vector<256x128xbf16>
    %48 = vector.shape_cast %29 : vector<1x16x16x128xbf16> to vector<256x128xbf16>
    %49 = vector.shape_cast %34 : vector<1x16x16x128xbf16> to vector<256x128xbf16>
    %50 = vector.shape_cast %39 : vector<1x16x16x128xbf16> to vector<256x128xbf16>
    %51 = vector.shape_cast %44 : vector<1x16x16x128xbf16> to vector<256x128xbf16>
    %52 = tpu.concatenate %45, %46, %47, %48, %49, %50, %51 in 1 : vector<256x128xbf16>, vector<256x128xbf16>, vector<256x128xbf16>, vector<256x128xbf16>, vector<256x128xbf16>, vector<256x128xbf16>, vector<256x128xbf16> -> vector<256x896xbf16>
    %c0_13 = arith.constant 0 : index
    %c0_14 = arith.constant 0 : index
    %53 = vector.load %arg2[%c0_13, %c0_14] : memref<896x128xbf16, #tpu.memory_space<vmem>>, vector<896x128xbf16>
    %cst = arith.constant dense<0.000000e+00> : vector<256x128xf32>
    %54 = tpu.matmul %52, %53, %cst {dimension_numbers = #tpu.dot_dimension_numbers<[1], [0], [0], [1], [0, 0, 1, 1], [], []>} : vector<256x896xbf16>, vector<896x128xbf16>, vector<256x128xf32> -> vector<256x128xf32>
    %c0_15 = arith.constant 0 : index
    %c0_16 = arith.constant 0 : index
    %55 = vector.load %arg3[%c0_15, %c0_16] : memref<1x128xf32, #tpu.memory_space<vmem>>, vector<1x128xf32>
    %56 = vector.broadcast %55 : vector<1x128xf32> to vector<256x128xf32>
    %57 = arith.addf %54, %56 : vector<256x128xf32>
    %58 = vector.shape_cast %22 : vector<1x16x16x128xbf16> to vector<256x128xbf16>
    %59 = arith.extf %58 : vector<256x128xbf16> to vector<256x128xf32>
    %60 = arith.addf %57, %59 : vector<256x128xf32>
    %cst_17 = arith.constant 0.000000e+00 : f32
    %61 = vector.broadcast %cst_17 : f32 to vector<256x128xf32>
    %62 = arith.maximumf %60, %61 : vector<256x128xf32>
    %63 = vector.shape_cast %62 : vector<256x128xf32> to vector<1x16x16x128xf32>
    %c0_18 = arith.constant 0 : index
    %c0_19 = arith.constant 0 : index
    %c0_20 = arith.constant 0 : index
    %c0_21 = arith.constant 0 : index
    %64 = vector.load %arg4[%c0_18, %c0_19, %c0_20, %c0_21] : memref<1x16x16x128xf32, #tpu.memory_space<vmem>>, vector<1x16x16x128xf32>
    tpu.vector_store %arg4[%c0_18, %c0_19, %c0_20, %c0_21], %63 {strides = array<i32>} : memref<1x16x16x128xf32, #tpu.memory_space<vmem>>, vector<1x16x16x128xf32>,
    return
  }
  func.func @transform_0(%arg0: i32) -> (i32, i32, i32, i32) {
    %c0_i32 = arith.constant 0 : i32
    %c0_i32_0 = arith.constant 0 : i32
    %c0_i32_1 = arith.constant 0 : i32
    %c0_i32_2 = arith.constant 0 : i32
    return %arg0, %c0_i32, %c0_i32_0, %c0_i32_1 : i32, i32, i32, i32
  }
  func.func @transform_1(%arg0: i32) -> (i32, i32) {
    %c0_i32 = arith.constant 0 : i32
    %c0_i32_0 = arith.constant 0 : i32
    %c0_i32_1 = arith.constant 0 : i32
    return %c0_i32, %c0_i32_0 : i32, i32
  }
  func.func @transform_2(%arg0: i32) -> (i32, i32) {
    %c0_i32 = arith.constant 0 : i32
    %c0_i32_0 = arith.constant 0 : i32
    %c0_i32_1 = arith.constant 0 : i32
    return %c0_i32, %c0_i32_0 : i32, i32
  }
  func.func @transform_3(%arg0: i32) -> (i32, i32, i32, i32) {
    %c0_i32 = arith.constant 0 : i32
    %c0_i32_0 = arith.constant 0 : i32
    %c0_i32_1 = arith.constant 0 : i32
    %c0_i32_2 = arith.constant 0 : i32
    return %arg0, %c0_i32, %c0_i32_0, %c0_i32_1 : i32, i32, i32, i32
  }
}

</mosaic_0001>

<llo_original>
// kernel: tpu_custom_call.1
$region0: #{tpu_custom_call.1}
  #allocation0 [shape = 'u32[]', space=smem, size = 0x4, offset = 0x4, fixed_abs, tag = 'smem constant byte address 0x4 - core index']
  #allocation1 [shape = 'u32[72,128]{1,0:T(1,128)}', space=vmem, size = 0x9000, scoped, tag = 'internal scratch']
  %s0 = inlined_call_operand.hbm [shape: bf16[2,18,24,128], index: 0, kind: input, shape index: {}]
  %s1 = inlined_call_operand.hbm [shape: bf16[896,128], index: 1, kind: input, shape index: {}]
  %s2 = inlined_call_operand.vmem [shape: f32[1,128], index: 2, kind: input, shape index: {}]
  %s3 = inlined_call_operand.hbm [shape: f32[2,16,16,128], index: 3, kind: output, shape index: {}]
  %s4 = sld [smem:[#allocation0]]
  $region53: #{tpu_custom_call.1} parent=0
    _
  %s6 = ssub.s32 1, %s4
  %s7 = scalar_select 0, %s6, %s4
  $region1: #{tpu_custom_call.1} parent=0
    #allocation2 [shape = 'u8[221184]{0}', space=vmem, size = 0x36000, scoped, tag = 'input window, operand 0']
    #allocation3 [shape = 's32[2]{0}', space=sflag, size = 0x8, scoped, tag = 'scoped memory for tpu_custom_call.1']
    #allocation4 [shape = 's32[2]{0}', space=sflag, size = 0x8, scoped, tag = 'scoped memory for tpu_custom_call.1']
    #allocation5 [shape = 'u8[229376]{0}', space=vmem, size = 0x38000, scoped, tag = 'input window, operand 1, single buffered']
    #allocation6 [shape = 's32[1]{0}', space=sflag, size = 0x4, scoped, tag = 'scoped memory for tpu_custom_call.1']
    #allocation7 [shape = 'u8[262144]{0}', space=vmem, size = 0x40000, scoped, tag = 'output window, operand 0']
    %8 = vsyncpa [#allocation3], 0
    %s9 = scalar_lea.sflag [#allocation3], 1
    %10 = vsyncpa %s9, 0
    %11 = vsyncpa [#allocation6], 0
    %12 = vsyncpa [#allocation4], 0
    %s13 = scalar_lea.sflag [#allocation4], 1
    %14 = vsyncpa %s13, 0
    loop: start=0, step=1, limit=4
    $region2: #{tpu_custom_call.1} parent=1 // loop_pre_header
      _
    $region3: #{tpu_custom_call.1} parent=1 // loop_header
      %s16 = sphi 0, %s20
      %p17 = scmp.ge.s32.totalorder %s16, 4
      %s26 = sphi 0, %s28
      %s29 = sphi 0, %s26
      %s30 = sphi 0, %s29
      %s46 = sphi 0, %s30
      %s50 = sphi 0, %s50
      %s52 = sphi 0, %s50
      %s53 = sphi 0, %s52
      %s67 = sphi 0, %s53
      %s71 = sphi 0, %s71
      %s73 = sphi 0, %s71
      %s74 = sphi 0, %s73
      %s88 = sphi 0, %s74
      %s94 = sphi 0, %s96
      %s97 = sphi 0, %s94
      %s98 = sphi 0, %s97
      %s114 = sphi 0, %s98
    $region4: #{tpu_custom_call.1} parent=1 // loop_header_branch
      %19 = sbr.rel (%p17) target = $region8
    $region5: #{tpu_custom_call.1} parent=1 // loop_body
      %s21 = ssub.s32 %s16, 1
      %s22 = ssub.s32 %s16, 2
      %s23 = sadd.s32 %s16, 1
      %s24 = ssub.s32 %s16, %s23
      %p25 = scmp.eq.s32.totalorder %s24, 0
      %s27 = sadd.s32 %s26, 1
      %s28 = scalar_select %p25, %s26, %s27
      %p31 = pneg %p25
      %p32 = scmp.eq.s32.totalorder %s16, 1
      %p33 = por %p31, %p32
      %p34 = scmp.ne.s32.totalorder %s26, %s29
      %p35 = scmp.eq.s32.totalorder %s16, 0
      %p36 = por %p34, %p35
      %p37 = scmp.ne.s32.totalorder %s26, %s29
      %p38 = scmp.eq.s32.totalorder %s21, 1
      %p39 = por %p37, %p38
      %p40 = scmp.ne.s32.totalorder %s29, %s30
      %p41 = scmp.eq.s32.totalorder %s21, 0
      %p42 = por %p40, %p41
      %p43 = scmp.ne.s32.totalorder %s29, %s30
      %p44 = scmp.eq.s32.totalorder %s22, 1
      %p45 = por %p43, %p44
      %p47 = scmp.ne.s32.totalorder %s30, %s46
      %p48 = scmp.eq.s32.totalorder %s22, 0
      %p49 = por %p47, %p48
      %s51 = sadd.s32 %s50, 1
      %p54 = scmp.eq.s32.totalorder %s16, 1
      %p55 = scmp.ne.s32.totalorder %s50, %s52
      %p56 = scmp.eq.s32.totalorder %s16, 0
      %p57 = por %p55, %p56
      %p58 = scmp.ne.s32.totalorder %s50, %s52
      %p59 = scmp.eq.s32.totalorder %s21, 1
      %p60 = por %p58, %p59
      %p61 = scmp.ne.s32.totalorder %s52, %s53
      %p62 = scmp.eq.s32.totalorder %s21, 0
      %p63 = por %p61, %p62
      %p64 = scmp.ne.s32.totalorder %s52, %s53
      %p65 = scmp.eq.s32.totalorder %s22, 1
      %p66 = por %p64, %p65
      %p68 = scmp.ne.s32.totalorder %s53, %s67
      %p69 = scmp.eq.s32.totalorder %s22, 0
      %p70 = por %p68, %p69
      %s72 = sadd.s32 %s71, 1
      %p75 = scmp.eq.s32.totalorder %s16, 1
      %p76 = scmp.ne.s32.totalorder %s71, %s73
      %p77 = scmp.eq.s32.totalorder %s16, 0
      %p78 = por %p76, %p77
      %p79 = scmp.ne.s32.totalorder %s71, %s73
      %p80 = scmp.eq.s32.totalorder %s21, 1
      %p81 = por %p79, %p80
      %p82 = scmp.ne.s32.totalorder %s73, %s74
      %p83 = scmp.eq.s32.totalorder %s21, 0
      %p84 = por %p82, %p83
      %p85 = scmp.ne.s32.totalorder %s73, %s74
      %p86 = scmp.eq.s32.totalorder %s22, 1
      %p87 = por %p85, %p86
      %p89 = scmp.ne.s32.totalorder %s74, %s88
      %p90 = scmp.eq.s32.totalorder %s22, 0
      %p91 = por %p89, %p90
      %s92 = ssub.s32 %s16, %s23
      %p93 = scmp.eq.s32.totalorder %s92, 0
      %s95 = sadd.s32 %s94, 1
      %s96 = scalar_select %p93, %s94, %s95
      %p99 = pneg %p93
      %p100 = scmp.eq.s32.totalorder %s16, 1
      %p101 = por %p99, %p100
      %p102 = scmp.ne.s32.totalorder %s94, %s97
      %p103 = scmp.eq.s32.totalorder %s16, 0
      %p104 = por %p102, %p103
      %p105 = scmp.ne.s32.totalorder %s94, %s97
      %p106 = scmp.eq.s32.totalorder %s21, 1
      %p107 = por %p105, %p106
      %p108 = scmp.ne.s32.totalorder %s97, %s98
      %p109 = scmp.eq.s32.totalorder %s21, 0
      %p110 = por %p108, %p109
      %p111 = scmp.ne.s32.totalorder %s97, %s98
      %p112 = scmp.eq.s32.totalorder %s22, 1
      %p113 = por %p111, %p112
      %p115 = scmp.ne.s32.totalorder %s98, %s114
      %p116 = scmp.eq.s32.totalorder %s22, 0
      %p117 = por %p115, %p116
      %p118 = scmp.le.s32.totalorder 1, %s16
      %p119 = scmp.lt.s32.totalorder %s16, 3
      %p120 = pnand %p118, %p119
      %p121 = pneg %p120
      // Predicated region
      $region9: #{tpu_custom_call.1} parent=5 // pred_check
        _
      $region10: #{tpu_custom_call.1} parent=5 // pred_check_branch
        %123 = sbr.rel (%p120) target = $region12
      $region11: #{tpu_custom_call.1} parent=5 // pred_region
        %s124 = ssub.s32 %s16, 1
        // Predicated region
        $region13: #{tpu_custom_call.1} parent=11 // pred_check
          %p125 = pneg %p63
        $region14: #{tpu_custom_call.1} parent=11 // pred_check_branch
          %127 = sbr.rel (%p125) target = $region16
        $region15: #{tpu_custom_call.1} parent=11 // pred_region
          %129 = vsyncadd [#allocation6], 0
          %s130 = sshll.u32 %s1, 4
          %s131 = int_to_ptr.hbm [resolvable:$true] %s130
          %s132 = sshll.u32 [#allocation5], 4
          %s133 = int_to_ptr.vmem [resolvable:$true] %s132
          %138 = dma.hbm_to_vmem [thread:$0]  %s131, 7168, %s133, [#allocation6], 64, 64, 4
        $region16: #{tpu_custom_call.1} parent=11 // pred_fallthru
          _
        // Predicated region
        $region17: #{tpu_custom_call.1} parent=11 // pred_check
          %p139 = pneg %p84
        $region18: #{tpu_custom_call.1} parent=11 // pred_check_branch
          %141 = sbr.rel (%p139) target = $region20
        $region19: #{tpu_custom_call.1} parent=11 // pred_region
          _
        $region20: #{tpu_custom_call.1} parent=11 // pred_fallthru
          _
      $region12: #{tpu_custom_call.1} parent=5 // pred_fallthru
        _
      %p142 = scmp.lt.s32.totalorder %s16, 2
      // Predicated region
      $region21: #{tpu_custom_call.1} parent=5 // pred_check
        %p143 = pneg %p142
      $region22: #{tpu_custom_call.1} parent=5 // pred_check_branch
        %145 = sbr.rel (%p143) target = $region24
      $region23: #{tpu_custom_call.1} parent=5 // pred_region
        // Predicated region
        $region25: #{tpu_custom_call.1} parent=23 // pred_check
          %p146 = pneg %p36
        $region26: #{tpu_custom_call.1} parent=23 // pred_check_branch
          %148 = sbr.rel (%p146) target = $region28
        $region27: #{tpu_custom_call.1} parent=23 // pred_region
          %s149 = sand.u32 %s26, 1
          %s150 = scalar_lea.sflag [#allocation3], %s149
          %s151 = sand.u32 %s26, 1
          %s152 = smul.addr %s151, 216
          %s153 = scalar_lea.vmem [#allocation2], %s152
          %155 = vsyncadd %s150, 0
          %s156 = smul.addr %s16, 54
          %s157 = smul.addr %s156, 4
          %s158 = scalar_lea.hbm %s0, %s157
          %s159 = sshll.u32 %s158, 4
          %s160 = int_to_ptr.hbm [resolvable:$true] %s159
          %s161 = sshll.u32 %s153, 4
          %s162 = int_to_ptr.vmem [resolvable:$true] %s161
          %167 = dma.hbm_to_vmem [thread:$0]  %s160, 3456, %s162, %s150, 64, 64, 4
        $region28: #{tpu_custom_call.1} parent=23 // pred_fallthru
          _
      $region24: #{tpu_custom_call.1} parent=5 // pred_fallthru
        _
      %p168 = scmp.le.s32.totalorder 1, %s16
      %p169 = scmp.lt.s32.totalorder %s16, 3
      %p170 = pnand %p168, %p169
      %p171 = pneg %p170
      // Predicated region
      $region29: #{tpu_custom_call.1} parent=5 // pred_check
        _
      $region30: #{tpu_custom_call.1} parent=5 // pred_check_branch
        %173 = sbr.rel (%p170) target = $region32
      $region31: #{tpu_custom_call.1} parent=5 // pred_region
        %s174 = ssub.s32 %s16, 1
        %s175 = sand.u32 %s29, 1
        %s176 = scalar_lea.sflag [#allocation3], %s175
        %s177 = sand.u32 %s29, 1
        %s178 = smul.addr %s177, 216
        %s179 = scalar_lea.vmem [#allocation2], %s178
        // Predicated region
        $region33: #{tpu_custom_call.1} parent=31 // pred_check
          %p180 = pneg %p42
        $region34: #{tpu_custom_call.1} parent=31 // pred_check_branch
          %182 = sbr.rel (%p180) target = $region36
        $region35: #{tpu_custom_call.1} parent=31 // pred_region
          %184 = dma.done %s176, 3456
        $region36: #{tpu_custom_call.1} parent=31 // pred_fallthru
          _
        // Predicated region
        $region37: #{tpu_custom_call.1} parent=31 // pred_check
          %p185 = pneg %p63
        $region38: #{tpu_custom_call.1} parent=31 // pred_check_branch
          %187 = sbr.rel (%p185) target = $region40
        $region39: #{tpu_custom_call.1} parent=31 // pred_region
          %189 = dma.done [#allocation6], 7168
        $region40: #{tpu_custom_call.1} parent=31 // pred_fallthru
          _
        %s190 = sand.u32 %s29, 1
        %s191 = scalar_lea.sflag [#allocation3], %s190
        %s192 = sand.u32 %s29, 1
        %s193 = smul.addr %s192, 216
        %s194 = scalar_lea.vmem [#allocation2], %s193
        %p195 = pneg %p42
        %p196 = pneg %p39
        %p197 = pneg %p63
        %p198 = pneg %p60
        %p199 = pneg %p84
        %p200 = pneg %p81
        %p201 = pneg %p110
        %p202 = pneg %p107
        %s203 = sand.u32 %s97, 1
        %s204 = scalar_lea.sflag [#allocation4], %s203
        %s205 = sand.u32 %s97, 1
        %s206 = smul.addr %s205, 256
        %s207 = scalar_lea.vmem [#allocation7], %s206
        %v210 = vld [vmem:[%s179] sm:$0xf]
        %v211 = vld [vmem:[%s179 + $0x4] sm:$0xf]
        %v212 = vld [vmem:[%s179 + $0xc] sm:$0xf]
        %v213 = vld [vmem:[%s179 + $0x10] sm:$0xf]
        %v214 = vld [vmem:[%s179 + $0x18] sm:$0xf]
        %v215 = vld [vmem:[%s179 + $0x1c] sm:$0xf]
        %v216 = vld [vmem:[%s179 + $0x24] sm:$0xf]
        %v217 = vld [vmem:[%s179 + $0x28] sm:$0xf]
        %v218 = vld [vmem:[%s179 + $0x30] sm:$0xf]
        %v219 = vld [vmem:[%s179 + $0x34] sm:$0xf]
        %v220 = vld [vmem:[%s179 + $0x3c] sm:$0xf]
        %v221 = vld [vmem:[%s179 + $0x40] sm:$0xf]
        %v222 = vld [vmem:[%s179 + $0x48] sm:$0xf]
        %v223 = vld [vmem:[%s179 + $0x4c] sm:$0xf]
        %v224 = vld [vmem:[%s179 + $0x54] sm:$0xf]
        %v225 = vld [vmem:[%s179 + $0x58] sm:$0xf]
        %v226 = vld [vmem:[%s179 + $0x60] sm:$0xf]
        %v227 = vld [vmem:[%s179 + $0x64] sm:$0xf]
        %v228 = vld [vmem:[%s179 + $0x6c] sm:$0xf]
        %v229 = vld [vmem:[%s179 + $0x70] sm:$0xf]
        %v230 = vld [vmem:[%s179 + $0x78] sm:$0xf]
        %v231 = vld [vmem:[%s179 + $0x7c] sm:$0xf]
        %v232 = vld [vmem:[%s179 + $0x84] sm:$0xf]
        %v233 = vld [vmem:[%s179 + $0x88] sm:$0xf]
        %v234 = vld [vmem:[%s179 + $0x90] sm:$0xf]
        %v235 = vld [vmem:[%s179 + $0x94] sm:$0xf]
        %v236 = vld [vmem:[%s179 + $0x9c] sm:$0xf]
        %v237 = vld [vmem:[%s179 + $0xa0] sm:$0xf]
        %v238 = vld [vmem:[%s179 + $0xa8] sm:$0xf]
        %v239 = vld [vmem:[%s179 + $0xac] sm:$0xf]
        %v240 = vld [vmem:[%s179 + $0xb4] sm:$0xf]
        %v241 = vld [vmem:[%s179 + $0xb8] sm:$0xf]
        %v242 = vld [vmem:[%s179 + $0xc0] sm:$0xf]
        %v243 = vld [vmem:[%s179 + $0xc4] sm:$0xf]
        %v244 = vld [vmem:[%s179 + $0xcc] sm:$0xf]
        %v245 = vld [vmem:[%s179 + $0xd0] sm:$0xf]
        %v246 = vld [vmem:[%s179] sm:$0xf]
        %v247 = vld [vmem:[%s179 + $0x4] sm:$0xf]
        %v248 = vld [vmem:[%s179 + $0x8] sm:$0x1]
        %v249 = vld [vmem:[%s179 + $0xc] sm:$0xf]
        %v250 = vld [vmem:[%s179 + $0x10] sm:$0xf]
        %v251 = vld [vmem:[%s179 + $0x14] sm:$0x1]
        %v252 = vld [vmem:[%s179 + $0x18] sm:$0xf]
        %v253 = vld [vmem:[%s179 + $0x1c] sm:$0xf]
        %v254 = vld [vmem:[%s179 + $0x20] sm:$0x1]
        %v255 = vld [vmem:[%s179 + $0x24] sm:$0xf]
        %v256 = vld [vmem:[%s179 + $0x28] sm:$0xf]
        %v257 = vld [vmem:[%s179 + $0x2c] sm:$0x1]
        %v258 = vld [vmem:[%s179 + $0x30] sm:$0xf]
        %v259 = vld [vmem:[%s179 + $0x34] sm:$0xf]
        %v260 = vld [vmem:[%s179 + $0x38] sm:$0x1]
        %v261 = vld [vmem:[%s179 + $0x3c] sm:$0xf]
        %v262 = vld [vmem:[%s179 + $0x40] sm:$0xf]
        %v263 = vld [vmem:[%s179 + $0x44] sm:$0x1]
        %v264 = vld [vmem:[%s179 + $0x48] sm:$0xf]
        %v265 = vld [vmem:[%s179 + $0x4c] sm:$0xf]
        %v266 = vld [vmem:[%s179 + $0x50] sm:$0x1]
        %v267 = vld [vmem:[%s179 + $0x54] sm:$0xf]
        %v268 = vld [vmem:[%s179 + $0x58] sm:$0xf]
        %v269 = vld [vmem:[%s179 + $0x5c] sm:$0x1]
        %v270 = vld [vmem:[%s179 + $0x60] sm:$0xf]
        %v271 = vld [vmem:[%s179 + $0x64] sm:$0xf]
        %v272 = vld [vmem:[%s179 + $0x68] sm:$0x1]
        %v273 = vld [vmem:[%s179 + $0x6c] sm:$0xf]
        %v274 = vld [vmem:[%s179 + $0x70] sm:$0xf]
        %v275 = vld [vmem:[%s179 + $0x74] sm:$0x1]
        %v276 = vld [vmem:[%s179 + $0x78] sm:$0xf]
        %v277 = vld [vmem:[%s179 + $0x7c] sm:$0xf]
        %v278 = vld [vmem:[%s179 + $0x80] sm:$0x1]
        %v279 = vld [vmem:[%s179 + $0x84] sm:$0xf]
        %v280 = vld [vmem:[%s179 + $0x88] sm:$0xf]
        %v281 = vld [vmem:[%s179 + $0x8c] sm:$0x1]
        %v282 = vld [vmem:[%s179 + $0x90] sm:$0xf]
        %v283 = vld [vmem:[%s179 + $0x94] sm:$0xf]
        %v284 = vld [vmem:[%s179 + $0x98] sm:$0x1]
        %v285 = vld [vmem:[%s179 + $0x9c] sm:$0xf]
        %v286 = vld [vmem:[%s179 + $0xa0] sm:$0xf]
        %v287 = vld [vmem:[%s179 + $0xa4] sm:$0x1]
        %v288 = vld [vmem:[%s179 + $0xa8] sm:$0xf]
        %v289 = vld [vmem:[%s179 + $0xac] sm:$0xf]
        %v290 = vld [vmem:[%s179 + $0xb0] sm:$0x1]
        %v291 = vld [vmem:[%s179 + $0xb4] sm:$0xf]
        %v292 = vld [vmem:[%s179 + $0xb8] sm:$0xf]
        %v293 = vld [vmem:[%s179 + $0xbc] sm:$0x1]
        %v294 = vld [vmem:[%s179 + $0xc0] sm:$0xf]
        %v295 = vld [vmem:[%s179 + $0xc4] sm:$0xf]
        %v296 = vld [vmem:[%s179 + $0xc8] sm:$0x1]
        %v297 = vld [vmem:[%s179 + $0xcc] sm:$0xf]
        %v298 = vld [vmem:[%s179 + $0xd0] sm:$0xf]
        %v299 = vld [vmem:[%s179 + $0xd4] sm:$0x1]
        %v300 = vld [vmem:[%s179] sm:$0xe]
        %v301 = vld [vmem:[%s179 + $0xc] sm:$0xe]
        %v302 = vld [vmem:[%s179 + $0x18] sm:$0xe]
        %v303 = vld [vmem:[%s179 + $0x24] sm:$0xe]
        %v304 = vld [vmem:[%s179 + $0x30] sm:$0xe]
        %v305 = vld [vmem:[%s179 + $0x3c] sm:$0xe]
        %v306 = vld [vmem:[%s179 + $0x48] sm:$0xe]
        %v307 = vld [vmem:[%s179 + $0x54] sm:$0xe]
        %v308 = vld [vmem:[%s179 + $0x60] sm:$0xe]
        %v309 = vld [vmem:[%s179 + $0x6c] sm:$0xe]
        %v310 = vld [vmem:[%s179 + $0x78] sm:$0xe]
        %v311 = vld [vmem:[%s179 + $0x84] sm:$0xe]
        %v312 = vld [vmem:[%s179 + $0x90] sm:$0xe]
        %v313 = vld [vmem:[%s179 + $0x9c] sm:$0xe]
        %v314 = vld [vmem:[%s179 + $0xa8] sm:$0xe]
        %v315 = vld [vmem:[%s179 + $0xb4] sm:$0xe]
        %v316 = vld [vmem:[%s179 + $0xc0] sm:$0xe]
        %v317 = vld [vmem:[%s179 + $0xcc] sm:$0xe]
        %v318 = vlaneseq
        %v319 = vshrl.u32 %v318, 7
        %v320 = vadd.s32 %v319, 8
        %vm321 = vcmp.lt.s32.totalorder %v319, 0
        %v322 = vsub.s32 0, %v319
        %v323 = vsel %vm321, %v322, %v319
        %v324 = vshrl.u32 %v323, 1
        %v325 = vand.u32 %v323, 1
        %v326 = vsub.s32 0, %v325
        %v327 = vsel %vm321, %v326, %v325
        %vm328 = vcmp.lt.s32.totalorder %v320, 0
        %v329 = vsub.s32 0, %v320
        %v330 = vsel %vm328, %v329, %v320
        %v331 = vshrl.u32 %v330, 1
        %v332 = vand.u32 %v330, 1
        %v333 = vsub.s32 0, %v332
        %v334 = vsel %vm328, %v333, %v332
        %vm335 = vcmp.ne.s32.totalorder %v327, 0
        %vm336 = vcmp.ne.s32.totalorder %v334, 0
        %vm337 = vcmp.lt.s32.totalorder %v327, 0
        %vm338 = vcmp.lt.s32.totalorder %v334, 0
        %vm339 = vmand %vm337, %vm335
        %vm340 = vmand %vm338, %vm336
        %v341 = vadd.s32 %v327, 2
        %v342 = vadd.s32 %v334, 2
        %v343 = vsel %vm339, %v341, %v327
        %v344 = vsel %vm340, %v342, %v334
        %vm345 = vcmp.eq.s32.totalorder %v343, 1
        %vm346 = vcmp.eq.s32.totalorder %v344, 1
        %v347 = vsel %vm345, 1, 0
        %v348 = vsel %vm346, 1, 0
        %vm349 = vcmp.eq.s32.totalorder %v347, 1
        %vm350 = vcmp.eq.s32.totalorder %v348, 1
        %vm351 = vmpackc.low %vm349, %vm349
        %vm352 = vmpackc.low %vm350, %vm350
        %v353 = vsel %vm351, %v212, %v210
        %v354 = vsel %vm352, %v213, %v211
        %v355 = vsel %vm351, %v214, %v212
        %v356 = vsel %vm352, %v215, %v213
        %v357 = vsel %vm351, %v216, %v214
        %v358 = vsel %vm352, %v217, %v215
        %v359 = vsel %vm351, %v218, %v216
        %v360 = vsel %vm352, %v219, %v217
        %v361 = vsel %vm351, %v220, %v218
        %v362 = vsel %vm352, %v221, %v219
        %v363 = vsel %vm351, %v222, %v220
        %v364 = vsel %vm352, %v223, %v221
        %v365 = vsel %vm351, %v224, %v222
        %v366 = vsel %vm352, %v225, %v223
        %v367 = vsel %vm351, %v226, %v224
        %v368 = vsel %vm352, %v227, %v225
        %v369 = vsel %vm351, %v228, %v226
        %v370 = vsel %vm352, %v229, %v227
        %v371 = vsel %vm351, %v230, %v228
        %v372 = vsel %vm352, %v231, %v229
        %v373 = vsel %vm351, %v232, %v230
        %v374 = vsel %vm352, %v233, %v231
        %v375 = vsel %vm351, %v234, %v232
        %v376 = vsel %vm352, %v235, %v233
        %v377 = vsel %vm351, %v236, %v234
        %v378 = vsel %vm352, %v237, %v235
        %v379 = vsel %vm351, %v238, %v236
        %v380 = vsel %vm352, %v239, %v237
        %v381 = vsel %vm351, %v240, %v238
        %v382 = vsel %vm352, %v241, %v239
        %v383 = vsel %vm351, %v242, %v240
        %v384 = vsel %vm352, %v243, %v241
        %v385 = vsel %vm351, %v244, %v242
        %v386 = vsel %vm352, %v245, %v243
        %v387 = vsel %vm351, 65537, 0
        %v388 = vsel %vm352, 65537, 0
        %vm389 = vcmask 1040384
        %vm390 = vcmask 1044484
        %vm391 = vmor %vm389, %vm390
        %v392 = vrot.slane %v387, 7
        %v393 = vrot.slane %v392, 4
        %v394 = vrot.slane %v388, 7
        %v395 = vsel %vm391, %v393, %v394
        %v396 = vrot.slane %v394, 4
        %v397 = vunpack.c.l.b16 %v392
        %v398 = vunpack.c.h.b16 %v392
        %v399 = vunpack.c.l.b16 0
        %v400 = vunpack.c.h.b16 0
        %vm401 = vcmp.ne.s32.totalorder %v397, %v399
        %vm402 = vcmp.ne.s32.totalorder %v398, %v400
        %vm403 = vmpackc.low %vm402, %vm401
        %v404 = vunpack.c.l.b16 %v395
        %v405 = vunpack.c.h.b16 %v395
        %v406 = vunpack.c.l.b16 0
        %v407 = vunpack.c.h.b16 0
        %vm408 = vcmp.ne.s32.totalorder %v404, %v406
        %vm409 = vcmp.ne.s32.totalorder %v405, %v407
        %vm410 = vmpackc.low %vm409, %vm408
        %v411 = vunpack.c.l.b16 %v396
        %v412 = vunpack.c.h.b16 %v396
        %v413 = vunpack.c.l.b16 0
        %v414 = vunpack.c.h.b16 0
        %vm415 = vcmp.ne.s32.totalorder %v411, %v413
        %vm416 = vcmp.ne.s32.totalorder %v412, %v414
        %vm417 = vmpackc.low %vm416, %vm415
        %v418 = vsel %vm403, %v301, %v300
        %v419 = vsel %vm410, %v250, %v247
        %v420 = vsel %vm417, %v251, %v248
        %v421 = vsel %vm403, %v302, %v301
        %v422 = vsel %vm410, %v253, %v250
        %v423 = vsel %vm417, %v254, %v251
        %v424 = vsel %vm403, %v303, %v302
        %v425 = vsel %vm410, %v256, %v253
        %v426 = vsel %vm417, %v257, %v254
        %v427 = vsel %vm403, %v304, %v303
        %v428 = vsel %vm410, %v259, %v256
        %v429 = vsel %vm417, %v260, %v257
        %v430 = vsel %vm403, %v305, %v304
        %v431 = vsel %vm410, %v262, %v259
        %v432 = vsel %vm417, %v263, %v260
        %v433 = vsel %vm403, %v306, %v305
        %v434 = vsel %vm410, %v265, %v262
        %v435 = vsel %vm417, %v266, %v263
        %v436 = vsel %vm403, %v307, %v306
        %v437 = vsel %vm410, %v268, %v265
        %v438 = vsel %vm417, %v269, %v266
        %v439 = vsel %vm403, %v308, %v307
        %v440 = vsel %vm410, %v271, %v268
        %v441 = vsel %vm417, %v272, %v269
        %v442 = vsel %vm403, %v309, %v308
        %v443 = vsel %vm410, %v274, %v271
        %v444 = vsel %vm417, %v275, %v272
        %v445 = vsel %vm403, %v310, %v309
        %v446 = vsel %vm410, %v277, %v274
        %v447 = vsel %vm417, %v278, %v275
        %v448 = vsel %vm403, %v311, %v310
        %v449 = vsel %vm410, %v280, %v277
        %v450 = vsel %vm417, %v281, %v278
        %v451 = vsel %vm403, %v312, %v311
        %v452 = vsel %vm410, %v283, %v280
        %v453 = vsel %vm417, %v284, %v281
        %v454 = vsel %vm403, %v313, %v312
        %v455 = vsel %vm410, %v286, %v283
        %v456 = vsel %vm417, %v287, %v284
        %v457 = vsel %vm403, %v314, %v313
        %v458 = vsel %vm410, %v289, %v286
        %v459 = vsel %vm417, %v290, %v287
        %v460 = vsel %vm403, %v315, %v314
        %v461 = vsel %vm410, %v292, %v289
        %v462 = vsel %vm417, %v293, %v290
        %v463 = vsel %vm403, %v316, %v315
        %v464 = vsel %vm410, %v295, %v292
        %v465 = vsel %vm417, %v296, %v293
        %v466 = vsel %vm403, %v317, %v316
        %v467 = vsel %vm410, %v298, %v295
        %v468 = vsel %vm417, %v299, %v296
        %vm469 = vsmask.f32 3328
        %vm470 = vsmask.f32 7440
        %vm471 = vmor %vm469, %vm470
        %v473 = vshrl.u32 %v249, 16
        %v475 = vrot.slane %v473, 4
        %v476 = vshll.u32 %v249, 16
        %v478 = vrot.slane %v476, 5
        %v479 = vor.u32 %v475, %v478
        %v480 = vrot.slane %v479, 4
        %v482 = vshll.u32 %v250, 16
        %v484 = vrot.slane %v482, 5
        %v485 = vsel %vm471, %v480, %v484
        %v486 = vshrl.u32 %v250, 16
        %v488 = vrot.slane %v486, 4
        %v489 = vor.u32 %v488, %v484
        %v490 = vrot.slane %v489, 4
        %v492 = vshll.u32 %v251, 16
        %v494 = vrot.slane %v492, 5
        %v495 = vsel %vm471, %v490, %v494
        %v497 = vshrl.u32 %v252, 16
        %v499 = vrot.slane %v497, 4
        %v500 = vshll.u32 %v252, 16
        %v502 = vrot.slane %v500, 5
        %v503 = vor.u32 %v499, %v502
        %v504 = vrot.slane %v503, 4
        %v506 = vshll.u32 %v253, 16
        %v508 = vrot.slane %v506, 5
        %v509 = vsel %vm471, %v504, %v508
        %v510 = vshrl.u32 %v253, 16
        %v512 = vrot.slane %v510, 4
        %v513 = vor.u32 %v512, %v508
        %v514 = vrot.slane %v513, 4
        %v516 = vshll.u32 %v254, 16
        %v518 = vrot.slane %v516, 5
        %v519 = vsel %vm471, %v514, %v518
        %v521 = vshrl.u32 %v255, 16
        %v523 = vrot.slane %v521, 4
        %v524 = vshll.u32 %v255, 16
        %v526 = vrot.slane %v524, 5
        %v527 = vor.u32 %v523, %v526
        %v528 = vrot.slane %v527, 4
        %v530 = vshll.u32 %v256, 16
        %v532 = vrot.slane %v530, 5
        %v533 = vsel %vm471, %v528, %v532
        %v534 = vshrl.u32 %v256, 16
        %v536 = vrot.slane %v534, 4
        %v537 = vor.u32 %v536, %v532
        %v538 = vrot.slane %v537, 4
        %v540 = vshll.u32 %v257, 16
        %v542 = vrot.slane %v540, 5
        %v543 = vsel %vm471, %v538, %v542
        %v545 = vshrl.u32 %v258, 16
        %v547 = vrot.slane %v545, 4
        %v548 = vshll.u32 %v258, 16
        %v550 = vrot.slane %v548, 5
        %v551 = vor.u32 %v547, %v550
        %v552 = vrot.slane %v551, 4
        %v554 = vshll.u32 %v259, 16
        %v556 = vrot.slane %v554, 5
        %v557 = vsel %vm471, %v552, %v556
        %v558 = vshrl.u32 %v259, 16
        %v560 = vrot.slane %v558, 4
        %v561 = vor.u32 %v560, %v556
        %v562 = vrot.slane %v561, 4
        %v564 = vshll.u32 %v260, 16
        %v566 = vrot.slane %v564, 5
        %v567 = vsel %vm471, %v562, %v566
        %v569 = vshrl.u32 %v261, 16
        %v571 = vrot.slane %v569, 4
        %v572 = vshll.u32 %v261, 16
        %v574 = vrot.slane %v572, 5
        %v575 = vor.u32 %v571, %v574
        %v576 = vrot.slane %v575, 4
        %v578 = vshll.u32 %v262, 16
        %v580 = vrot.slane %v578, 5
        %v581 = vsel %vm471, %v576, %v580
        %v582 = vshrl.u32 %v262, 16
        %v584 = vrot.slane %v582, 4
        %v585 = vor.u32 %v584, %v580
        %v586 = vrot.slane %v585, 4
        %v588 = vshll.u32 %v263, 16
        %v590 = vrot.slane %v588, 5
        %v591 = vsel %vm471, %v586, %v590
        %v593 = vshrl.u32 %v264, 16
        %v595 = vrot.slane %v593, 4
        %v596 = vshll.u32 %v264, 16
        %v598 = vrot.slane %v596, 5
        %v599 = vor.u32 %v595, %v598
        %v600 = vrot.slane %v599, 4
        %v602 = vshll.u32 %v265, 16
        %v604 = vrot.slane %v602, 5
        %v605 = vsel %vm471, %v600, %v604
        %v606 = vshrl.u32 %v265, 16
        %v608 = vrot.slane %v606, 4
        %v609 = vor.u32 %v608, %v604
        %v610 = vrot.slane %v609, 4
        %v612 = vshll.u32 %v266, 16
        %v614 = vrot.slane %v612, 5
        %v615 = vsel %vm471, %v610, %v614
        %v617 = vshrl.u32 %v267, 16
        %v619 = vrot.slane %v617, 4
        %v620 = vshll.u32 %v267, 16
        %v622 = vrot.slane %v620, 5
        %v623 = vor.u32 %v619, %v622
        %v624 = vrot.slane %v623, 4
        %v626 = vshll.u32 %v268, 16
        %v628 = vrot.slane %v626, 5
        %v629 = vsel %vm471, %v624, %v628
        %v630 = vshrl.u32 %v268, 16
        %v632 = vrot.slane %v630, 4
        %v633 = vor.u32 %v632, %v628
        %v634 = vrot.slane %v633, 4
        %v636 = vshll.u32 %v269, 16
        %v638 = vrot.slane %v636, 5
        %v639 = vsel %vm471, %v634, %v638
        %v641 = vshrl.u32 %v270, 16
        %v643 = vrot.slane %v641, 4
        %v644 = vshll.u32 %v270, 16
        %v646 = vrot.slane %v644, 5
        %v647 = vor.u32 %v643, %v646
        %v648 = vrot.slane %v647, 4
        %v650 = vshll.u32 %v271, 16
        %v652 = vrot.slane %v650, 5
        %v653 = vsel %vm471, %v648, %v652
        %v654 = vshrl.u32 %v271, 16
        %v656 = vrot.slane %v654, 4
        %v657 = vor.u32 %v656, %v652
        %v658 = vrot.slane %v657, 4
        %v660 = vshll.u32 %v272, 16
        %v662 = vrot.slane %v660, 5
        %v663 = vsel %vm471, %v658, %v662
        %v665 = vshrl.u32 %v273, 16
        %v667 = vrot.slane %v665, 4
        %v668 = vshll.u32 %v273, 16
        %v670 = vrot.slane %v668, 5
        %v671 = vor.u32 %v667, %v670
        %v672 = vrot.slane %v671, 4
        %v674 = vshll.u32 %v274, 16
        %v676 = vrot.slane %v674, 5
        %v677 = vsel %vm471, %v672, %v676
        %v678 = vshrl.u32 %v274, 16
        %v680 = vrot.slane %v678, 4
        %v681 = vor.u32 %v680, %v676
        %v682 = vrot.slane %v681, 4
        %v684 = vshll.u32 %v275, 16
        %v686 = vrot.slane %v684, 5
        %v687 = vsel %vm471, %v682, %v686
        %v689 = vshrl.u32 %v276, 16
        %v691 = vrot.slane %v689, 4
        %v692 = vshll.u32 %v276, 16
        %v694 = vrot.slane %v692, 5
        %v695 = vor.u32 %v691, %v694
        %v696 = vrot.slane %v695, 4
        %v698 = vshll.u32 %v277, 16
        %v700 = vrot.slane %v698, 5
        %v701 = vsel %vm471, %v696, %v700
        %v702 = vshrl.u32 %v277, 16
        %v704 = vrot.slane %v702, 4
        %v705 = vor.u32 %v704, %v700
        %v706 = vrot.slane %v705, 4
        %v708 = vshll.u32 %v278, 16
        %v710 = vrot.slane %v708, 5
        %v711 = vsel %vm471, %v706, %v710
        %v713 = vshrl.u32 %v279, 16
        %v715 = vrot.slane %v713, 4
        %v716 = vshll.u32 %v279, 16
        %v718 = vrot.slane %v716, 5
        %v719 = vor.u32 %v715, %v718
        %v720 = vrot.slane %v719, 4
        %v722 = vshll.u32 %v280, 16
        %v724 = vrot.slane %v722, 5
        %v725 = vsel %vm471, %v720, %v724
        %v726 = vshrl.u32 %v280, 16
        %v728 = vrot.slane %v726, 4
        %v729 = vor.u32 %v728, %v724
        %v730 = vrot.slane %v729, 4
        %v732 = vshll.u32 %v281, 16
        %v734 = vrot.slane %v732, 5
        %v735 = vsel %vm471, %v730, %v734
        %v737 = vshrl.u32 %v282, 16
        %v739 = vrot.slane %v737, 4
        %v740 = vshll.u32 %v282, 16
        %v742 = vrot.slane %v740, 5
        %v743 = vor.u32 %v739, %v742
        %v744 = vrot.slane %v743, 4
        %v746 = vshll.u32 %v283, 16
        %v748 = vrot.slane %v746, 5
        %v749 = vsel %vm471, %v744, %v748
        %v750 = vshrl.u32 %v283, 16
        %v752 = vrot.slane %v750, 4
        %v753 = vor.u32 %v752, %v748
        %v754 = vrot.slane %v753, 4
        %v756 = vshll.u32 %v284, 16
        %v758 = vrot.slane %v756, 5
        %v759 = vsel %vm471, %v754, %v758
        %v761 = vshrl.u32 %v285, 16
        %v763 = vrot.slane %v761, 4
        %v764 = vshll.u32 %v285, 16
        %v766 = vrot.slane %v764, 5
        %v767 = vor.u32 %v763, %v766
        %v768 = vrot.slane %v767, 4
        %v770 = vshll.u32 %v286, 16
        %v772 = vrot.slane %v770, 5
        %v773 = vsel %vm471, %v768, %v772
        %v774 = vshrl.u32 %v286, 16
        %v776 = vrot.slane %v774, 4
        %v777 = vor.u32 %v776, %v772
        %v778 = vrot.slane %v777, 4
        %v780 = vshll.u32 %v287, 16
        %v782 = vrot.slane %v780, 5
        %v783 = vsel %vm471, %v778, %v782
        %v785 = vshrl.u32 %v288, 16
        %v787 = vrot.slane %v785, 4
        %v788 = vshll.u32 %v288, 16
        %v790 = vrot.slane %v788, 5
        %v791 = vor.u32 %v787, %v790
        %v792 = vrot.slane %v791, 4
        %v794 = vshll.u32 %v289, 16
        %v796 = vrot.slane %v794, 5
        %v797 = vsel %vm471, %v792, %v796
        %v798 = vshrl.u32 %v289, 16
        %v800 = vrot.slane %v798, 4
        %v801 = vor.u32 %v800, %v796
        %v802 = vrot.slane %v801, 4
        %v804 = vshll.u32 %v290, 16
        %v806 = vrot.slane %v804, 5
        %v807 = vsel %vm471, %v802, %v806
        %v809 = vshrl.u32 %v291, 16
        %v811 = vrot.slane %v809, 4
        %v812 = vshll.u32 %v291, 16
        %v814 = vrot.slane %v812, 5
        %v815 = vor.u32 %v811, %v814
        %v816 = vrot.slane %v815, 4
        %v818 = vshll.u32 %v292, 16
        %v820 = vrot.slane %v818, 5
        %v821 = vsel %vm471, %v816, %v820
        %v822 = vshrl.u32 %v292, 16
        %v824 = vrot.slane %v822, 4
        %v825 = vor.u32 %v824, %v820
        %v826 = vrot.slane %v825, 4
        %v828 = vshll.u32 %v293, 16
        %v830 = vrot.slane %v828, 5
        %v831 = vsel %vm471, %v826, %v830
        %v833 = vshrl.u32 %v294, 16
        %v835 = vrot.slane %v833, 4
        %v836 = vshll.u32 %v294, 16
        %v838 = vrot.slane %v836, 5
        %v839 = vor.u32 %v835, %v838
        %v840 = vrot.slane %v839, 4
        %v842 = vshll.u32 %v295, 16
        %v844 = vrot.slane %v842, 5
        %v845 = vsel %vm471, %v840, %v844
        %v846 = vshrl.u32 %v295, 16
        %v848 = vrot.slane %v846, 4
        %v849 = vor.u32 %v848, %v844
        %v850 = vrot.slane %v849, 4
        %v852 = vshll.u32 %v296, 16
        %v854 = vrot.slane %v852, 5
        %v855 = vsel %vm471, %v850, %v854
        %v889 = vshrl.u32 %v246, 16
        %v891 = vrot.slane %v889, 4
        %v892 = vshll.u32 %v246, 16
        %v894 = vrot.slane %v892, 5
        %v895 = vor.u32 %v891, %v894
        %v896 = vrot.slane %v895, 4
        %v898 = vshll.u32 %v247, 16
        %v900 = vrot.slane %v898, 5
        %v901 = vsel %vm471, %v896, %v900
        %v902 = vshrl.u32 %v247, 16
        %v904 = vrot.slane %v902, 4
        %v905 = vor.u32 %v904, %v900
        %v906 = vrot.slane %v905, 4
        %v908 = vshll.u32 %v248, 16
        %v910 = vrot.slane %v908, 5
        %v911 = vsel %vm471, %v906, %v910
        %v913 = vshrl.u32 %v297, 16
        %v915 = vrot.slane %v913, 4
        %v916 = vshll.u32 %v297, 16
        %v918 = vrot.slane %v916, 5
        %v919 = vor.u32 %v915, %v918
        %v920 = vrot.slane %v919, 4
        %v922 = vshll.u32 %v298, 16
        %v924 = vrot.slane %v922, 5
        %v925 = vsel %vm471, %v920, %v924
        %v926 = vshrl.u32 %v298, 16
        %v928 = vrot.slane %v926, 4
        %v929 = vor.u32 %v928, %v924
        %v930 = vrot.slane %v929, 4
        %v932 = vshll.u32 %v299, 16
        %v934 = vrot.slane %v932, 5
        %v935 = vsel %vm471, %v930, %v934
        %vm984 = vcmask 1042432
        %vm985 = vcmask 1046532
        %vm986 = vmor %vm984, %vm985
        %v987 = vrot.slane %v418, 5
        %v988 = vrot.slane %v987, 4
        %v989 = vrot.slane %v419, 5
        %v990 = vsel %vm986, %v988, %v989
        %v991 = vrot.slane %v989, 4
        %v992 = vrot.slane %v420, 5
        %v993 = vsel %vm986, %v991, %v992
        %v994 = vrot.slane %v421, 5
        %v995 = vrot.slane %v994, 4
        %v996 = vrot.slane %v422, 5
        %v997 = vsel %vm986, %v995, %v996
        %v998 = vrot.slane %v996, 4
        %v999 = vrot.slane %v423, 5
        %v1000 = vsel %vm986, %v998, %v999
        %v1001 = vrot.slane %v424, 5
        %v1002 = vrot.slane %v1001, 4
        %v1003 = vrot.slane %v425, 5
        %v1004 = vsel %vm986, %v1002, %v1003
        %v1005 = vrot.slane %v1003, 4
        %v1006 = vrot.slane %v426, 5
        %v1007 = vsel %vm986, %v1005, %v1006
        %v1008 = vrot.slane %v427, 5
        %v1009 = vrot.slane %v1008, 4
        %v1010 = vrot.slane %v428, 5
        %v1011 = vsel %vm986, %v1009, %v1010
        %v1012 = vrot.slane %v1010, 4
        %v1013 = vrot.slane %v429, 5
        %v1014 = vsel %vm986, %v1012, %v1013
        %v1015 = vrot.slane %v430, 5
        %v1016 = vrot.slane %v1015, 4
        %v1017 = vrot.slane %v431, 5
        %v1018 = vsel %vm986, %v1016, %v1017
        %v1019 = vrot.slane %v1017, 4
        %v1020 = vrot.slane %v432, 5
        %v1021 = vsel %vm986, %v1019, %v1020
        %v1022 = vrot.slane %v433, 5
        %v1023 = vrot.slane %v1022, 4
        %v1024 = vrot.slane %v434, 5
        %v1025 = vsel %vm986, %v1023, %v1024
        %v1026 = vrot.slane %v1024, 4
        %v1027 = vrot.slane %v435, 5
        %v1028 = vsel %vm986, %v1026, %v1027
        %v1029 = vrot.slane %v436, 5
        %v1030 = vrot.slane %v1029, 4
        %v1031 = vrot.slane %v437, 5
        %v1032 = vsel %vm986, %v1030, %v1031
        %v1033 = vrot.slane %v1031, 4
        %v1034 = vrot.slane %v438, 5
        %v1035 = vsel %vm986, %v1033, %v1034
        %v1036 = vrot.slane %v439, 5
        %v1037 = vrot.slane %v1036, 4
        %v1038 = vrot.slane %v440, 5
        %v1039 = vsel %vm986, %v1037, %v1038
        %v1040 = vrot.slane %v1038, 4
        %v1041 = vrot.slane %v441, 5
        %v1042 = vsel %vm986, %v1040, %v1041
        %v1043 = vrot.slane %v442, 5
        %v1044 = vrot.slane %v1043, 4
        %v1045 = vrot.slane %v443, 5
        %v1046 = vsel %vm986, %v1044, %v1045
        %v1047 = vrot.slane %v1045, 4
        %v1048 = vrot.slane %v444, 5
        %v1049 = vsel %vm986, %v1047, %v1048
        %v1050 = vrot.slane %v445, 5
        %v1051 = vrot.slane %v1050, 4
        %v1052 = vrot.slane %v446, 5
        %v1053 = vsel %vm986, %v1051, %v1052
        %v1054 = vrot.slane %v1052, 4
        %v1055 = vrot.slane %v447, 5
        %v1056 = vsel %vm986, %v1054, %v1055
        %v1057 = vrot.slane %v448, 5
        %v1058 = vrot.slane %v1057, 4
        %v1059 = vrot.slane %v449, 5
        %v1060 = vsel %vm986, %v1058, %v1059
        %v1061 = vrot.slane %v1059, 4
        %v1062 = vrot.slane %v450, 5
        %v1063 = vsel %vm986, %v1061, %v1062
        %v1064 = vrot.slane %v451, 5
        %v1065 = vrot.slane %v1064, 4
        %v1066 = vrot.slane %v452, 5
        %v1067 = vsel %vm986, %v1065, %v1066
        %v1068 = vrot.slane %v1066, 4
        %v1069 = vrot.slane %v453, 5
        %v1070 = vsel %vm986, %v1068, %v1069
        %v1071 = vrot.slane %v454, 5
        %v1072 = vrot.slane %v1071, 4
        %v1073 = vrot.slane %v455, 5
        %v1074 = vsel %vm986, %v1072, %v1073
        %v1075 = vrot.slane %v1073, 4
        %v1076 = vrot.slane %v456, 5
        %v1077 = vsel %vm986, %v1075, %v1076
        %v1078 = vrot.slane %v457, 5
        %v1079 = vrot.slane %v1078, 4
        %v1080 = vrot.slane %v458, 5
        %v1081 = vsel %vm986, %v1079, %v1080
        %v1082 = vrot.slane %v1080, 4
        %v1083 = vrot.slane %v459, 5
        %v1084 = vsel %vm986, %v1082, %v1083
        %v1085 = vrot.slane %v460, 5
        %v1086 = vrot.slane %v1085, 4
        %v1087 = vrot.slane %v461, 5
        %v1088 = vsel %vm986, %v1086, %v1087
        %v1089 = vrot.slane %v1087, 4
        %v1090 = vrot.slane %v462, 5
        %v1091 = vsel %vm986, %v1089, %v1090
        %v1092 = vrot.slane %v463, 5
        %v1093 = vrot.slane %v1092, 4
        %v1094 = vrot.slane %v464, 5
        %v1095 = vsel %vm986, %v1093, %v1094
        %v1096 = vrot.slane %v1094, 4
        %v1097 = vrot.slane %v465, 5
        %v1098 = vsel %vm986, %v1096, %v1097
        %v1102 = vrot.slane %v466, 5
        %v1103 = vrot.slane %v1102, 4
        %v1104 = vrot.slane %v467, 5
        %v1105 = vsel %vm986, %v1103, %v1104
        %v1106 = vrot.slane %v1104, 4
        %v1107 = vrot.slane %v468, 5
        %v1108 = vsel %vm986, %v1106, %v1107
        %v1109 = vunpack.c.l.b16 %v485
        %v1110 = vunpack.c.l.b16 %v495
        %v1111 = vunpack.c.l.b16 %v509
        %v1112 = vunpack.c.l.b16 %v519
        %v1113 = vunpack.c.l.b16 %v533
        %v1114 = vunpack.c.l.b16 %v543
        %v1115 = vunpack.c.l.b16 %v557
        %v1116 = vunpack.c.l.b16 %v567
        %v1117 = vunpack.c.l.b16 %v581
        %v1118 = vunpack.c.l.b16 %v591
        %v1119 = vunpack.c.l.b16 %v605
        %v1120 = vunpack.c.l.b16 %v615
        %v1121 = vunpack.c.l.b16 %v629
        %v1122 = vunpack.c.l.b16 %v639
        %v1123 = vunpack.c.l.b16 %v653
        %v1124 = vunpack.c.l.b16 %v663
        %v1125 = vunpack.c.l.b16 %v677
        %v1126 = vunpack.c.l.b16 %v687
        %v1127 = vunpack.c.l.b16 %v701
        %v1128 = vunpack.c.l.b16 %v711
        %v1129 = vunpack.c.l.b16 %v725
        %v1130 = vunpack.c.l.b16 %v735
        %v1131 = vunpack.c.l.b16 %v749
        %v1132 = vunpack.c.l.b16 %v759
        %v1133 = vunpack.c.l.b16 %v773
        %v1134 = vunpack.c.l.b16 %v783
        %v1135 = vunpack.c.l.b16 %v797
        %v1136 = vunpack.c.l.b16 %v807
        %v1137 = vunpack.c.l.b16 %v821
        %v1138 = vunpack.c.l.b16 %v831
        %v1139 = vunpack.c.l.b16 %v845
        %v1140 = vunpack.c.l.b16 %v855
        %v1141 = vpack.c.b16 %v1110, %v1109
        %v1142 = vpack.c.b16 %v1112, %v1111
        %v1143 = vpack.c.b16 %v1114, %v1113
        %v1144 = vpack.c.b16 %v1116, %v1115
        %v1145 = vpack.c.b16 %v1118, %v1117
        %v1146 = vpack.c.b16 %v1120, %v1119
        %v1147 = vpack.c.b16 %v1122, %v1121
        %v1148 = vpack.c.b16 %v1124, %v1123
        %v1149 = vpack.c.b16 %v1126, %v1125
        %v1150 = vpack.c.b16 %v1128, %v1127
        %v1151 = vpack.c.b16 %v1130, %v1129
        %v1152 = vpack.c.b16 %v1132, %v1131
        %v1153 = vpack.c.b16 %v1134, %v1133
        %v1154 = vpack.c.b16 %v1136, %v1135
        %v1155 = vpack.c.b16 %v1138, %v1137
        %v1156 = vpack.c.b16 %v1140, %v1139
        %v1173 = vunpack.c.l.b16 %v901
        %v1174 = vunpack.c.l.b16 %v911
        %v1175 = vpack.c.b16 %v1174, %v1173
        %v1177 = vunpack.c.l.b16 %v925
        %v1178 = vunpack.c.l.b16 %v935
        %v1179 = vpack.c.b16 %v1178, %v1177
        %v1213 = vunpack.c.l.b16 %v353
        %v1214 = vunpack.c.l.b16 %v354
        %v1215 = vunpack.c.l.b16 %v355
        %v1216 = vunpack.c.l.b16 %v356
        %v1217 = vunpack.c.l.b16 %v357
        %v1218 = vunpack.c.l.b16 %v358
        %v1219 = vunpack.c.l.b16 %v359
        %v1220 = vunpack.c.l.b16 %v360
        %v1221 = vunpack.c.l.b16 %v361
        %v1222 = vunpack.c.l.b16 %v362
        %v1223 = vunpack.c.l.b16 %v363
        %v1224 = vunpack.c.l.b16 %v364
        %v1225 = vunpack.c.l.b16 %v365
        %v1226 = vunpack.c.l.b16 %v366
        %v1227 = vunpack.c.l.b16 %v367
        %v1228 = vunpack.c.l.b16 %v368
        %v1229 = vunpack.c.l.b16 %v369
        %v1230 = vunpack.c.l.b16 %v370
        %v1231 = vunpack.c.l.b16 %v371
        %v1232 = vunpack.c.l.b16 %v372
        %v1233 = vunpack.c.l.b16 %v373
        %v1234 = vunpack.c.l.b16 %v374
        %v1235 = vunpack.c.l.b16 %v375
        %v1236 = vunpack.c.l.b16 %v376
        %v1237 = vunpack.c.l.b16 %v377
        %v1238 = vunpack.c.l.b16 %v378
        %v1239 = vunpack.c.l.b16 %v379
        %v1240 = vunpack.c.l.b16 %v380
        %v1241 = vunpack.c.l.b16 %v381
        %v1242 = vunpack.c.l.b16 %v382
        %v1243 = vunpack.c.l.b16 %v383
        %v1244 = vunpack.c.l.b16 %v384
        %v1245 = vpack.c.b16 %v1214, %v1213
        %v1246 = vpack.c.b16 %v1216, %v1215
        %v1247 = vpack.c.b16 %v1218, %v1217
        %v1248 = vpack.c.b16 %v1220, %v1219
        %v1249 = vpack.c.b16 %v1222, %v1221
        %v1250 = vpack.c.b16 %v1224, %v1223
        %v1251 = vpack.c.b16 %v1226, %v1225
        %v1252 = vpack.c.b16 %v1228, %v1227
        %v1253 = vpack.c.b16 %v1230, %v1229
        %v1254 = vpack.c.b16 %v1232, %v1231
        %v1255 = vpack.c.b16 %v1234, %v1233
        %v1256 = vpack.c.b16 %v1236, %v1235
        %v1257 = vpack.c.b16 %v1238, %v1237
        %v1258 = vpack.c.b16 %v1240, %v1239
        %v1259 = vpack.c.b16 %v1242, %v1241
        %v1260 = vpack.c.b16 %v1244, %v1243
        %v1279 = vunpack.c.l.b16 %v385
        %v1280 = vunpack.c.l.b16 %v386
        %v1281 = vpack.c.b16 %v1280, %v1279
        %v1283 = vunpack.c.l.b16 %v990
        %v1284 = vunpack.c.l.b16 %v993
        %v1285 = vunpack.c.l.b16 %v997
        %v1286 = vunpack.c.l.b16 %v1000
        %v1287 = vunpack.c.l.b16 %v1004
        %v1288 = vunpack.c.l.b16 %v1007
        %v1289 = vunpack.c.l.b16 %v1011
        %v1290 = vunpack.c.l.b16 %v1014
        %v1291 = vunpack.c.l.b16 %v1018
        %v1292 = vunpack.c.l.b16 %v1021
        %v1293 = vunpack.c.l.b16 %v1025
        %v1294 = vunpack.c.l.b16 %v1028
        %v1295 = vunpack.c.l.b16 %v1032
        %v1296 = vunpack.c.l.b16 %v1035
        %v1297 = vunpack.c.l.b16 %v1039
        %v1298 = vunpack.c.l.b16 %v1042
        %v1299 = vunpack.c.l.b16 %v1046
        %v1300 = vunpack.c.l.b16 %v1049
        %v1301 = vunpack.c.l.b16 %v1053
        %v1302 = vunpack.c.l.b16 %v1056
        %v1303 = vunpack.c.l.b16 %v1060
        %v1304 = vunpack.c.l.b16 %v1063
        %v1305 = vunpack.c.l.b16 %v1067
        %v1306 = vunpack.c.l.b16 %v1070
        %v1307 = vunpack.c.l.b16 %v1074
        %v1308 = vunpack.c.l.b16 %v1077
        %v1309 = vunpack.c.l.b16 %v1081
        %v1310 = vunpack.c.l.b16 %v1084
        %v1311 = vunpack.c.l.b16 %v1088
        %v1312 = vunpack.c.l.b16 %v1091
        %v1313 = vunpack.c.l.b16 %v1095
        %v1314 = vunpack.c.l.b16 %v1098
        %v1315 = vpack.c.b16 %v1284, %v1283
        %v1316 = vpack.c.b16 %v1286, %v1285
        %v1317 = vpack.c.b16 %v1288, %v1287
        %v1318 = vpack.c.b16 %v1290, %v1289
        %v1319 = vpack.c.b16 %v1292, %v1291
        %v1320 = vpack.c.b16 %v1294, %v1293
        %v1321 = vpack.c.b16 %v1296, %v1295
        %v1322 = vpack.c.b16 %v1298, %v1297
        %v1323 = vpack.c.b16 %v1300, %v1299
        %v1324 = vpack.c.b16 %v1302, %v1301
        %v1325 = vpack.c.b16 %v1304, %v1303
        %v1326 = vpack.c.b16 %v1306, %v1305
        %v1327 = vpack.c.b16 %v1308, %v1307
        %v1328 = vpack.c.b16 %v1310, %v1309
        %v1329 = vpack.c.b16 %v1312, %v1311
        %v1330 = vpack.c.b16 %v1314, %v1313
        %v1347 = vunpack.c.l.b16 %v1105
        %v1348 = vunpack.c.l.b16 %v1108
        %v1349 = vpack.c.b16 %v1348, %v1347
        %v1351 = vld [vmem:[#allocation5] sm:$0xf]
        %v1352 = vld [vmem:[#allocation5 + $0x4] sm:$0xf]
        %v1353 = vld [vmem:[#allocation5 + $0x8] sm:$0xf]
        %v1354 = vld [vmem:[#allocation5 + $0xc] sm:$0xf]
        %v1355 = vld [vmem:[#allocation5 + $0x10] sm:$0xf]
        %v1356 = vld [vmem:[#allocation5 + $0x14] sm:$0xf]
        %v1357 = vld [vmem:[#allocation5 + $0x18] sm:$0xf]
        %v1358 = vld [vmem:[#allocation5 + $0x1c] sm:$0xf]
        %v1359 = vld [vmem:[#allocation5 + $0x20] sm:$0xf]
        %v1360 = vld [vmem:[#allocation5 + $0x24] sm:$0xf]
        %v1361 = vld [vmem:[#allocation5 + $0x28] sm:$0xf]
        %v1362 = vld [vmem:[#allocation5 + $0x2c] sm:$0xf]
        %v1363 = vld [vmem:[#allocation5 + $0x30] sm:$0xf]
        %v1364 = vld [vmem:[#allocation5 + $0x34] sm:$0xf]
        %v1365 = vld [vmem:[#allocation5 + $0x38] sm:$0xf]
        %v1366 = vld [vmem:[#allocation5 + $0x3c] sm:$0xf]
        %v1367 = vld [vmem:[#allocation5 + $0x40] sm:$0xf]
        %v1368 = vld [vmem:[#allocation5 + $0x44] sm:$0xf]
        %v1369 = vld [vmem:[#allocation5 + $0x48] sm:$0xf]
        %v1370 = vld [vmem:[#allocation5 + $0x4c] sm:$0xf]
        %v1371 = vld [vmem:[#allocation5 + $0x50] sm:$0xf]
        %v1372 = vld [vmem:[#allocation5 + $0x54] sm:$0xf]
        %v1373 = vld [vmem:[#allocation5 + $0x58] sm:$0xf]
        %v1374 = vld [vmem:[#allocation5 + $0x5c] sm:$0xf]
        %v1375 = vld [vmem:[#allocation5 + $0x60] sm:$0xf]
        %v1376 = vld [vmem:[#allocation5 + $0x64] sm:$0xf]
        %v1377 = vld [vmem:[#allocation5 + $0x68] sm:$0xf]
        %v1378 = vld [vmem:[#allocation5 + $0x6c] sm:$0xf]
        %v1379 = vld [vmem:[#allocation5 + $0x70] sm:$0xf]
        %v1380 = vld [vmem:[#allocation5 + $0x74] sm:$0xf]
        %v1381 = vld [vmem:[#allocation5 + $0x78] sm:$0xf]
        %v1382 = vld [vmem:[#allocation5 + $0x7c] sm:$0xf]
        %v1383 = vld [vmem:[#allocation5 + $0x80] sm:$0xf]
        %v1384 = vld [vmem:[#allocation5 + $0x84] sm:$0xf]
        %v1385 = vld [vmem:[#allocation5 + $0x88] sm:$0xf]
        %v1386 = vld [vmem:[#allocation5 + $0x8c] sm:$0xf]
        %v1387 = vld [vmem:[#allocation5 + $0x90] sm:$0xf]
        %v1388 = vld [vmem:[#allocation5 + $0x94] sm:$0xf]
        %v1389 = vld [vmem:[#allocation5 + $0x98] sm:$0xf]
        %v1390 = vld [vmem:[#allocation5 + $0x9c] sm:$0xf]
        %v1391 = vld [vmem:[#allocation5 + $0xa0] sm:$0xf]
        %v1392 = vld [vmem:[#allocation5 + $0xa4] sm:$0xf]
        %v1393 = vld [vmem:[#allocation5 + $0xa8] sm:$0xf]
        %v1394 = vld [vmem:[#allocation5 + $0xac] sm:$0xf]
        %v1395 = vld [vmem:[#allocation5 + $0xb0] sm:$0xf]
        %v1396 = vld [vmem:[#allocation5 + $0xb4] sm:$0xf]
        %v1397 = vld [vmem:[#allocation5 + $0xb8] sm:$0xf]
        %v1398 = vld [vmem:[#allocation5 + $0xbc] sm:$0xf]
        %v1399 = vld [vmem:[#allocation5 + $0xc0] sm:$0xf]
        %v1400 = vld [vmem:[#allocation5 + $0xc4] sm:$0xf]
        %v1401 = vld [vmem:[#allocation5 + $0xc8] sm:$0xf]
        %v1402 = vld [vmem:[#allocation5 + $0xcc] sm:$0xf]
        %v1403 = vld [vmem:[#allocation5 + $0xd0] sm:$0xf]
        %v1404 = vld [vmem:[#allocation5 + $0xd4] sm:$0xf]
        %v1405 = vld [vmem:[#allocation5 + $0xd8] sm:$0xf]
        %v1406 = vld [vmem:[#allocation5 + $0xdc] sm:$0xf]
        %v1407 = vld [vmem:[#allocation5 + $0xe0] sm:$0xf]
        %v1408 = vld [vmem:[#allocation5 + $0xe4] sm:$0xf]
        %v1409 = vld [vmem:[#allocation5 + $0xe8] sm:$0xf]
        %v1410 = vld [vmem:[#allocation5 + $0xec] sm:$0xf]
        %v1411 = vld [vmem:[#allocation5 + $0xf0] sm:$0xf]
        %v1412 = vld [vmem:[#allocation5 + $0xf4] sm:$0xf]
        %v1413 = vld [vmem:[#allocation5 + $0xf8] sm:$0xf]
        %v1414 = vld [vmem:[#allocation5 + $0xfc] sm:$0xf]
        %v1415 = vld [vmem:[#allocation5 + $0x100] sm:$0xf]
        %v1416 = vld [vmem:[#allocation5 + $0x104] sm:$0xf]
        %v1417 = vld [vmem:[#allocation5 + $0x108] sm:$0xf]
        %v1418 = vld [vmem:[#allocation5 + $0x10c] sm:$0xf]
        %v1419 = vld [vmem:[#allocation5 + $0x110] sm:$0xf]
        %v1420 = vld [vmem:[#allocation5 + $0x114] sm:$0xf]
        %v1421 = vld [vmem:[#allocation5 + $0x118] sm:$0xf]
        %v1422 = vld [vmem:[#allocation5 + $0x11c] sm:$0xf]
        %v1423 = vld [vmem:[#allocation5 + $0x120] sm:$0xf]
        %v1424 = vld [vmem:[#allocation5 + $0x124] sm:$0xf]
        %v1425 = vld [vmem:[#allocation5 + $0x128] sm:$0xf]
        %v1426 = vld [vmem:[#allocation5 + $0x12c] sm:$0xf]
        %v1427 = vld [vmem:[#allocation5 + $0x130] sm:$0xf]
        %v1428 = vld [vmem:[#allocation5 + $0x134] sm:$0xf]
        %v1429 = vld [vmem:[#allocation5 + $0x138] sm:$0xf]
        %v1430 = vld [vmem:[#allocation5 + $0x13c] sm:$0xf]
        %v1431 = vld [vmem:[#allocation5 + $0x140] sm:$0xf]
        %v1432 = vld [vmem:[#allocation5 + $0x144] sm:$0xf]
        %v1433 = vld [vmem:[#allocation5 + $0x148] sm:$0xf]
        %v1434 = vld [vmem:[#allocation5 + $0x14c] sm:$0xf]
        %v1435 = vld [vmem:[#allocation5 + $0x150] sm:$0xf]
        %v1436 = vld [vmem:[#allocation5 + $0x154] sm:$0xf]
        %v1437 = vld [vmem:[#allocation5 + $0x158] sm:$0xf]
        %v1438 = vld [vmem:[#allocation5 + $0x15c] sm:$0xf]
        %v1439 = vld [vmem:[#allocation5 + $0x160] sm:$0xf]
        %v1440 = vld [vmem:[#allocation5 + $0x164] sm:$0xf]
        %v1441 = vld [vmem:[#allocation5 + $0x168] sm:$0xf]
        %v1442 = vld [vmem:[#allocation5 + $0x16c] sm:$0xf]
        %v1443 = vld [vmem:[#allocation5 + $0x170] sm:$0xf]
        %v1444 = vld [vmem:[#allocation5 + $0x174] sm:$0xf]
        %v1445 = vld [vmem:[#allocation5 + $0x178] sm:$0xf]
        %v1446 = vld [vmem:[#allocation5 + $0x17c] sm:$0xf]
        %v1447 = vld [vmem:[#allocation5 + $0x180] sm:$0xf]
        %v1448 = vld [vmem:[#allocation5 + $0x184] sm:$0xf]
        %v1449 = vld [vmem:[#allocation5 + $0x188] sm:$0xf]
        %v1450 = vld [vmem:[#allocation5 + $0x18c] sm:$0xf]
        %v1451 = vld [vmem:[#allocation5 + $0x190] sm:$0xf]
        %v1452 = vld [vmem:[#allocation5 + $0x194] sm:$0xf]
        %v1453 = vld [vmem:[#allocation5 + $0x198] sm:$0xf]
        %v1454 = vld [vmem:[#allocation5 + $0x19c] sm:$0xf]
        %v1455 = vld [vmem:[#allocation5 + $0x1a0] sm:$0xf]
        %v1456 = vld [vmem:[#allocation5 + $0x1a4] sm:$0xf]
        %v1457 = vld [vmem:[#allocation5 + $0x1a8] sm:$0xf]
        %v1458 = vld [vmem:[#allocation5 + $0x1ac] sm:$0xf]
        %v1459 = vld [vmem:[#allocation5 + $0x1b0] sm:$0xf]
        %v1460 = vld [vmem:[#allocation5 + $0x1b4] sm:$0xf]
        %v1461 = vld [vmem:[#allocation5 + $0x1b8] sm:$0xf]
        %v1462 = vld [vmem:[#allocation5 + $0x1bc] sm:$0xf]
        %v1463 = vld [vmem:[%s2] sm:$0x1]
        %v1465 = vperm.slane %v1463, 0
        %v1579 = vunpack.c.l.b16 %v1351
        %v1580 = vunpack.c.l.b16 %v1352
        %v1581 = vunpack.c.l.b16 %v1353
        %v1582 = vunpack.c.l.b16 %v1354
        %v1583 = vunpack.c.l.b16 %v1355
        %v1584 = vunpack.c.l.b16 %v1356
        %v1585 = vunpack.c.l.b16 %v1357
        %v1586 = vunpack.c.l.b16 %v1358
        %v1587 = vunpack.c.l.b16 %v1359
        %v1588 = vunpack.c.l.b16 %v1360
        %v1589 = vunpack.c.l.b16 %v1361
        %v1590 = vunpack.c.l.b16 %v1362
        %v1591 = vunpack.c.l.b16 %v1363
        %v1592 = vunpack.c.l.b16 %v1364
        %v1593 = vunpack.c.l.b16 %v1365
        %v1594 = vunpack.c.l.b16 %v1366
        %v1595 = vunpack.c.l.b16 %v1367
        %v1596 = vunpack.c.l.b16 %v1368
        %v1597 = vunpack.c.l.b16 %v1369
        %v1598 = vunpack.c.l.b16 %v1370
        %v1599 = vunpack.c.l.b16 %v1371
        %v1600 = vunpack.c.l.b16 %v1372
        %v1601 = vunpack.c.l.b16 %v1373
        %v1602 = vunpack.c.l.b16 %v1374
        %v1603 = vunpack.c.l.b16 %v1375
        %v1604 = vunpack.c.l.b16 %v1376
        %v1605 = vunpack.c.l.b16 %v1377
        %v1606 = vunpack.c.l.b16 %v1378
        %v1607 = vunpack.c.l.b16 %v1379
        %v1608 = vunpack.c.l.b16 %v1380
        %v1609 = vunpack.c.l.b16 %v1381
        %v1610 = vunpack.c.l.b16 %v1382
        %v1611 = vunpack.c.l.b16 %v1383
        %v1612 = vunpack.c.l.b16 %v1384
        %v1613 = vunpack.c.l.b16 %v1385
        %v1614 = vunpack.c.l.b16 %v1386
        %v1615 = vunpack.c.l.b16 %v1387
        %v1616 = vunpack.c.l.b16 %v1388
        %v1617 = vunpack.c.l.b16 %v1389
        %v1618 = vunpack.c.l.b16 %v1390
        %v1619 = vunpack.c.l.b16 %v1391
        %v1620 = vunpack.c.l.b16 %v1392
        %v1621 = vunpack.c.l.b16 %v1393
        %v1622 = vunpack.c.l.b16 %v1394
        %v1623 = vunpack.c.l.b16 %v1395
        %v1624 = vunpack.c.l.b16 %v1396
        %v1625 = vunpack.c.l.b16 %v1397
        %v1626 = vunpack.c.l.b16 %v1398
        %v1627 = vunpack.c.l.b16 %v1399
        %v1628 = vunpack.c.l.b16 %v1400
        %v1629 = vunpack.c.l.b16 %v1401
        %v1630 = vunpack.c.l.b16 %v1402
        %v1631 = vunpack.c.l.b16 %v1403
        %v1632 = vunpack.c.l.b16 %v1404
        %v1633 = vunpack.c.l.b16 %v1405
        %v1634 = vunpack.c.l.b16 %v1406
        %v1635 = vunpack.c.l.b16 %v1407
        %v1636 = vunpack.c.l.b16 %v1408
        %v1637 = vunpack.c.l.b16 %v1409
        %v1638 = vunpack.c.l.b16 %v1410
        %v1639 = vunpack.c.l.b16 %v1411
        %v1640 = vunpack.c.l.b16 %v1412
        %v1641 = vunpack.c.l.b16 %v1413
        %v1642 = vunpack.c.l.b16 %v1414
        %v1643 = vunpack.c.l.b16 %v1415
        %v1644 = vunpack.c.l.b16 %v1416
        %v1645 = vunpack.c.l.b16 %v1417
        %v1646 = vunpack.c.l.b16 %v1418
        %v1647 = vunpack.c.l.b16 %v1419
        %v1648 = vunpack.c.l.b16 %v1420
        %v1649 = vunpack.c.l.b16 %v1421
        %v1650 = vunpack.c.l.b16 %v1422
        %v1651 = vunpack.c.l.b16 %v1423
        %v1652 = vunpack.c.l.b16 %v1424
        %v1653 = vunpack.c.l.b16 %v1425
        %v1654 = vunpack.c.l.b16 %v1426
        %v1655 = vunpack.c.l.b16 %v1427
        %v1656 = vunpack.c.l.b16 %v1428
        %v1657 = vunpack.c.l.b16 %v1429
        %v1658 = vunpack.c.l.b16 %v1430
        %v1659 = vunpack.c.l.b16 %v1431
        %v1660 = vunpack.c.l.b16 %v1432
        %v1661 = vunpack.c.l.b16 %v1433
        %v1662 = vunpack.c.l.b16 %v1434
        %v1663 = vunpack.c.l.b16 %v1435
        %v1664 = vunpack.c.l.b16 %v1436
        %v1665 = vunpack.c.l.b16 %v1437
        %v1666 = vunpack.c.l.b16 %v1438
        %v1667 = vunpack.c.l.b16 %v1439
        %v1668 = vunpack.c.l.b16 %v1440
        %v1669 = vunpack.c.l.b16 %v1441
        %v1670 = vunpack.c.l.b16 %v1442
        %v1671 = vunpack.c.l.b16 %v1443
        %v1672 = vunpack.c.l.b16 %v1444
        %v1673 = vunpack.c.l.b16 %v1445
        %v1674 = vunpack.c.l.b16 %v1446
        %v1675 = vunpack.c.l.b16 %v1447
        %v1676 = vunpack.c.l.b16 %v1448
        %v1677 = vunpack.c.l.b16 %v1449
        %v1678 = vunpack.c.l.b16 %v1450
        %v1679 = vunpack.c.l.b16 %v1451
        %v1680 = vunpack.c.l.b16 %v1452
        %v1681 = vunpack.c.l.b16 %v1453
        %v1682 = vunpack.c.l.b16 %v1454
        %v1683 = vunpack.c.l.b16 %v1455
        %v1684 = vunpack.c.l.b16 %v1456
        %v1685 = vunpack.c.l.b16 %v1457
        %v1686 = vunpack.c.l.b16 %v1458
        %v1687 = vunpack.c.l.b16 %v1459
        %v1688 = vunpack.c.l.b16 %v1460
        %v1689 = vunpack.c.l.b16 %v1461
        %v1690 = vunpack.c.l.b16 %v1462
        %v1691 = vpack.c.b16 %v1580, %v1579
        %v1692 = vpack.c.b16 %v1582, %v1581
        %v1693 = vpack.c.b16 %v1584, %v1583
        %v1694 = vpack.c.b16 %v1586, %v1585
        %v1695 = vpack.c.b16 %v1588, %v1587
        %v1696 = vpack.c.b16 %v1590, %v1589
        %v1697 = vpack.c.b16 %v1592, %v1591
        %v1698 = vpack.c.b16 %v1594, %v1593
        %v1699 = vpack.c.b16 %v1596, %v1595
        %v1700 = vpack.c.b16 %v1598, %v1597
        %v1701 = vpack.c.b16 %v1600, %v1599
        %v1702 = vpack.c.b16 %v1602, %v1601
        %v1703 = vpack.c.b16 %v1604, %v1603
        %v1704 = vpack.c.b16 %v1606, %v1605
        %v1705 = vpack.c.b16 %v1608, %v1607
        %v1706 = vpack.c.b16 %v1610, %v1609
        %v1707 = vpack.c.b16 %v1612, %v1611
        %v1708 = vpack.c.b16 %v1614, %v1613
        %v1709 = vpack.c.b16 %v1616, %v1615
        %v1710 = vpack.c.b16 %v1618, %v1617
        %v1711 = vpack.c.b16 %v1620, %v1619
        %v1712 = vpack.c.b16 %v1622, %v1621
        %v1713 = vpack.c.b16 %v1624, %v1623
        %v1714 = vpack.c.b16 %v1626, %v1625
        %v1715 = vpack.c.b16 %v1628, %v1627
        %v1716 = vpack.c.b16 %v1630, %v1629
        %v1717 = vpack.c.b16 %v1632, %v1631
        %v1718 = vpack.c.b16 %v1634, %v1633
        %v1719 = vpack.c.b16 %v1636, %v1635
        %v1720 = vpack.c.b16 %v1638, %v1637
        %v1721 = vpack.c.b16 %v1640, %v1639
        %v1722 = vpack.c.b16 %v1642, %v1641
        %v1723 = vpack.c.b16 %v1644, %v1643
        %v1724 = vpack.c.b16 %v1646, %v1645
        %v1725 = vpack.c.b16 %v1648, %v1647
        %v1726 = vpack.c.b16 %v1650, %v1649
        %v1727 = vpack.c.b16 %v1652, %v1651
        %v1728 = vpack.c.b16 %v1654, %v1653
        %v1729 = vpack.c.b16 %v1656, %v1655
        %v1730 = vpack.c.b16 %v1658, %v1657
        %v1731 = vpack.c.b16 %v1660, %v1659
        %v1732 = vpack.c.b16 %v1662, %v1661
        %v1733 = vpack.c.b16 %v1664, %v1663
        %v1734 = vpack.c.b16 %v1666, %v1665
        %v1735 = vpack.c.b16 %v1668, %v1667
        %v1736 = vpack.c.b16 %v1670, %v1669
        %v1737 = vpack.c.b16 %v1672, %v1671
        %v1738 = vpack.c.b16 %v1674, %v1673
        %v1739 = vpack.c.b16 %v1676, %v1675
        %v1740 = vpack.c.b16 %v1678, %v1677
        %v1741 = vpack.c.b16 %v1680, %v1679
        %v1742 = vpack.c.b16 %v1682, %v1681
        %v1743 = vpack.c.b16 %v1684, %v1683
        %v1744 = vpack.c.b16 %v1686, %v1685
        %v1745 = vpack.c.b16 %v1688, %v1687
        %v1746 = vpack.c.b16 %v1690, %v1689
        %1803 = vmatpush.bf16.msra.mxu0 %v1698
        %1804 = vmatpush.bf16.msra.mxu0 %v1697
        %1805 = vmatpush.bf16.msra.mxu0 %v1696
        %1806 = vmatpush.bf16.msra.mxu0 %v1695
        %1807 = vmatpush.bf16.msra.mxu0 %v1694
        %1808 = vmatpush.bf16.msra.mxu0 %v1693
        %1809 = vmatpush.bf16.msra.mxu0 %v1692
        %1810 = vmatpush.bf16.msra.mxu0 %v1691
        %1811 = vmatmul.bf16.gmra.mxu0 %v1141
        %v1812 = vpop.f32.mrf.mxu0
        %v1813 = vadd.f32 %v1465, %v1812
        %v1814 = vpop.f32.mrf.mxu0
        %v1815 = vadd.f32 %v1465, %v1814
        %1816 = vmatmul.bf16.gmra.mxu0 %v1142
        %v1817 = vpop.f32.mrf.mxu0
        %v1818 = vadd.f32 %v1465, %v1817
        %v1819 = vpop.f32.mrf.mxu0
        %v1820 = vadd.f32 %v1465, %v1819
        %1821 = vmatmul.bf16.gmra.mxu0 %v1143
        %v1822 = vpop.f32.mrf.mxu0
        %v1823 = vadd.f32 %v1465, %v1822
        %v1824 = vpop.f32.mrf.mxu0
        %v1825 = vadd.f32 %v1465, %v1824
        %1826 = vmatmul.bf16.gmra.mxu0 %v1144
        %v1827 = vpop.f32.mrf.mxu0
        %v1828 = vadd.f32 %v1465, %v1827
        %v1829 = vpop.f32.mrf.mxu0
        %v1830 = vadd.f32 %v1465, %v1829
        %1831 = vmatmul.bf16.gmra.mxu0 %v1145
        %v1832 = vpop.f32.mrf.mxu0
        %v1833 = vadd.f32 %v1465, %v1832
        %v1834 = vpop.f32.mrf.mxu0
        %v1835 = vadd.f32 %v1465, %v1834
        %1836 = vmatmul.bf16.gmra.mxu0 %v1146
        %v1837 = vpop.f32.mrf.mxu0
        %v1838 = vadd.f32 %v1465, %v1837
        %v1839 = vpop.f32.mrf.mxu0
        %v1840 = vadd.f32 %v1465, %v1839
        %1841 = vmatmul.bf16.gmra.mxu0 %v1147
        %v1842 = vpop.f32.mrf.mxu0
        %v1843 = vadd.f32 %v1465, %v1842
        %v1844 = vpop.f32.mrf.mxu0
        %v1845 = vadd.f32 %v1465, %v1844
        %1846 = vmatmul.bf16.gmra.mxu0 %v1148
        %v1847 = vpop.f32.mrf.mxu0
        %v1848 = vadd.f32 %v1465, %v1847
        %v1849 = vpop.f32.mrf.mxu0
        %v1850 = vadd.f32 %v1465, %v1849
        %1851 = vmatmul.bf16.gmra.mxu0 %v1149
        %v1852 = vpop.f32.mrf.mxu0
        %v1853 = vadd.f32 %v1465, %v1852
        %v1854 = vpop.f32.mrf.mxu0
        %v1855 = vadd.f32 %v1465, %v1854
        %1856 = vmatmul.bf16.gmra.mxu0 %v1150
        %v1857 = vpop.f32.mrf.mxu0
        %v1858 = vadd.f32 %v1465, %v1857
        %v1859 = vpop.f32.mrf.mxu0
        %v1860 = vadd.f32 %v1465, %v1859
        %1861 = vmatmul.bf16.gmra.mxu0 %v1151
        %v1862 = vpop.f32.mrf.mxu0
        %v1863 = vadd.f32 %v1465, %v1862
        %v1864 = vpop.f32.mrf.mxu0
        %v1865 = vadd.f32 %v1465, %v1864
        %1866 = vmatmul.bf16.gmra.mxu0 %v1152
        %v1867 = vpop.f32.mrf.mxu0
        %v1868 = vadd.f32 %v1465, %v1867
        %v1869 = vpop.f32.mrf.mxu0
        %v1870 = vadd.f32 %v1465, %v1869
        %1871 = vmatmul.bf16.gmra.mxu0 %v1153
        %v1872 = vpop.f32.mrf.mxu0
        %v1873 = vadd.f32 %v1465, %v1872
        %v1874 = vpop.f32.mrf.mxu0
        %v1875 = vadd.f32 %v1465, %v1874
        %1876 = vmatmul.bf16.gmra.mxu0 %v1154
        %v1877 = vpop.f32.mrf.mxu0
        %v1878 = vadd.f32 %v1465, %v1877
        %v1879 = vpop.f32.mrf.mxu0
        %v1880 = vadd.f32 %v1465, %v1879
        %1881 = vmatmul.bf16.gmra.mxu0 %v1155
        %v1882 = vpop.f32.mrf.mxu0
        %v1883 = vadd.f32 %v1465, %v1882
        %v1884 = vpop.f32.mrf.mxu0
        %v1885 = vadd.f32 %v1465, %v1884
        %1886 = vmatmul.bf16.gmra.mxu0 %v1156
        %v1887 = vpop.f32.mrf.mxu0
        %v1888 = vadd.f32 %v1465, %v1887
        %v1889 = vpop.f32.mrf.mxu0
        %v1890 = vadd.f32 %v1465, %v1889
        %1891 = vdwg.mxu0
        %1892 = vmatpush.bf16.msra.mxu0 %v1706
        %1893 = vmatpush.bf16.msra.mxu0 %v1705
        %1894 = vmatpush.bf16.msra.mxu0 %v1704
        %1895 = vmatpush.bf16.msra.mxu0 %v1703
        %1896 = vmatpush.bf16.msra.mxu0 %v1702
        %1897 = vmatpush.bf16.msra.mxu0 %v1701
        %1898 = vmatpush.bf16.msra.mxu0 %v1700
        %1899 = vmatpush.bf16.msra.mxu0 %v1699
        %1900 = vmatmul.bf16.gmra.mxu0 %v1175
        %v1901 = vpop.f32.mrf.mxu0
        %v1902 = vadd.f32 %v1813, %v1901
        %v1903 = vpop.f32.mrf.mxu0
        %v1904 = vadd.f32 %v1815, %v1903
        %1905 = vmatmul.bf16.gmra.mxu0 %v1141
        %v1906 = vpop.f32.mrf.mxu0
        %v1907 = vadd.f32 %v1818, %v1906
        %v1908 = vpop.f32.mrf.mxu0
        %v1909 = vadd.f32 %v1820, %v1908
        %1910 = vmatmul.bf16.gmra.mxu0 %v1142
        %v1911 = vpop.f32.mrf.mxu0
        %v1912 = vadd.f32 %v1823, %v1911
        %v1913 = vpop.f32.mrf.mxu0
        %v1914 = vadd.f32 %v1825, %v1913
        %1915 = vmatmul.bf16.gmra.mxu0 %v1143
        %v1916 = vpop.f32.mrf.mxu0
        %v1917 = vadd.f32 %v1828, %v1916
        %v1918 = vpop.f32.mrf.mxu0
        %v1919 = vadd.f32 %v1830, %v1918
        %1920 = vmatmul.bf16.gmra.mxu0 %v1144
        %v1921 = vpop.f32.mrf.mxu0
        %v1922 = vadd.f32 %v1833, %v1921
        %v1923 = vpop.f32.mrf.mxu0
        %v1924 = vadd.f32 %v1835, %v1923
        %1925 = vmatmul.bf16.gmra.mxu0 %v1145
        %v1926 = vpop.f32.mrf.mxu0
        %v1927 = vadd.f32 %v1838, %v1926
        %v1928 = vpop.f32.mrf.mxu0
        %v1929 = vadd.f32 %v1840, %v1928
        %1930 = vmatmul.bf16.gmra.mxu0 %v1146
        %v1931 = vpop.f32.mrf.mxu0
        %v1932 = vadd.f32 %v1843, %v1931
        %v1933 = vpop.f32.mrf.mxu0
        %v1934 = vadd.f32 %v1845, %v1933
        %1935 = vmatmul.bf16.gmra.mxu0 %v1147
        %v1936 = vpop.f32.mrf.mxu0
        %v1937 = vadd.f32 %v1848, %v1936
        %v1938 = vpop.f32.mrf.mxu0
        %v1939 = vadd.f32 %v1850, %v1938
        %1940 = vmatmul.bf16.gmra.mxu0 %v1148
        %v1941 = vpop.f32.mrf.mxu0
        %v1942 = vadd.f32 %v1853, %v1941
        %v1943 = vpop.f32.mrf.mxu0
        %v1944 = vadd.f32 %v1855, %v1943
        %1945 = vmatmul.bf16.gmra.mxu0 %v1149
        %v1946 = vpop.f32.mrf.mxu0
        %v1947 = vadd.f32 %v1858, %v1946
        %v1948 = vpop.f32.mrf.mxu0
        %v1949 = vadd.f32 %v1860, %v1948
        %1950 = vmatmul.bf16.gmra.mxu0 %v1150
        %v1951 = vpop.f32.mrf.mxu0
        %v1952 = vadd.f32 %v1863, %v1951
        %v1953 = vpop.f32.mrf.mxu0
        %v1954 = vadd.f32 %v1865, %v1953
        %1955 = vmatmul.bf16.gmra.mxu0 %v1151
        %v1956 = vpop.f32.mrf.mxu0
        %v1957 = vadd.f32 %v1868, %v1956
        %v1958 = vpop.f32.mrf.mxu0
        %v1959 = vadd.f32 %v1870, %v1958
        %1960 = vmatmul.bf16.gmra.mxu0 %v1152
        %v1961 = vpop.f32.mrf.mxu0
        %v1962 = vadd.f32 %v1873, %v1961
        %v1963 = vpop.f32.mrf.mxu0
        %v1964 = vadd.f32 %v1875, %v1963
        %1965 = vmatmul.bf16.gmra.mxu0 %v1153
        %v1966 = vpop.f32.mrf.mxu0
        %v1967 = vadd.f32 %v1878, %v1966
        %v1968 = vpop.f32.mrf.mxu0
        %v1969 = vadd.f32 %v1880, %v1968
        %1970 = vmatmul.bf16.gmra.mxu0 %v1154
        %v1971 = vpop.f32.mrf.mxu0
        %v1972 = vadd.f32 %v1883, %v1971
        %v1973 = vpop.f32.mrf.mxu0
        %v1974 = vadd.f32 %v1885, %v1973
        %1975 = vmatmul.bf16.gmra.mxu0 %v1155
        %v1976 = vpop.f32.mrf.mxu0
        %v1977 = vadd.f32 %v1888, %v1976
        %v1978 = vpop.f32.mrf.mxu0
        %v1979 = vadd.f32 %v1890, %v1978
        %1980 = vdwg.mxu0
        %1981 = vmatpush.bf16.msra.mxu0 %v1714
        %1982 = vmatpush.bf16.msra.mxu0 %v1713
        %1983 = vmatpush.bf16.msra.mxu0 %v1712
        %1984 = vmatpush.bf16.msra.mxu0 %v1711
        %1985 = vmatpush.bf16.msra.mxu0 %v1710
        %1986 = vmatpush.bf16.msra.mxu0 %v1709
        %1987 = vmatpush.bf16.msra.mxu0 %v1708
        %1988 = vmatpush.bf16.msra.mxu0 %v1707
        %1989 = vmatmul.bf16.gmra.mxu0 %v1142
        %v1990 = vpop.f32.mrf.mxu0
        %v1991 = vadd.f32 %v1902, %v1990
        %v1992 = vpop.f32.mrf.mxu0
        %v1993 = vadd.f32 %v1904, %v1992
        %1994 = vmatmul.bf16.gmra.mxu0 %v1143
        %v1995 = vpop.f32.mrf.mxu0
        %v1996 = vadd.f32 %v1907, %v1995
        %v1997 = vpop.f32.mrf.mxu0
        %v1998 = vadd.f32 %v1909, %v1997
        %1999 = vmatmul.bf16.gmra.mxu0 %v1144
        %v2000 = vpop.f32.mrf.mxu0
        %v2001 = vadd.f32 %v1912, %v2000
        %v2002 = vpop.f32.mrf.mxu0
        %v2003 = vadd.f32 %v1914, %v2002
        %2004 = vmatmul.bf16.gmra.mxu0 %v1145
        %v2005 = vpop.f32.mrf.mxu0
        %v2006 = vadd.f32 %v1917, %v2005
        %v2007 = vpop.f32.mrf.mxu0
        %v2008 = vadd.f32 %v1919, %v2007
        %2009 = vmatmul.bf16.gmra.mxu0 %v1146
        %v2010 = vpop.f32.mrf.mxu0
        %v2011 = vadd.f32 %v1922, %v2010
        %v2012 = vpop.f32.mrf.mxu0
        %v2013 = vadd.f32 %v1924, %v2012
        %2014 = vmatmul.bf16.gmra.mxu0 %v1147
        %v2015 = vpop.f32.mrf.mxu0
        %v2016 = vadd.f32 %v1927, %v2015
        %v2017 = vpop.f32.mrf.mxu0
        %v2018 = vadd.f32 %v1929, %v2017
        %2019 = vmatmul.bf16.gmra.mxu0 %v1148
        %v2020 = vpop.f32.mrf.mxu0
        %v2021 = vadd.f32 %v1932, %v2020
        %v2022 = vpop.f32.mrf.mxu0
        %v2023 = vadd.f32 %v1934, %v2022
        %2024 = vmatmul.bf16.gmra.mxu0 %v1149
        %v2025 = vpop.f32.mrf.mxu0
        %v2026 = vadd.f32 %v1937, %v2025
        %v2027 = vpop.f32.mrf.mxu0
        %v2028 = vadd.f32 %v1939, %v2027
        %2029 = vmatmul.bf16.gmra.mxu0 %v1150
        %v2030 = vpop.f32.mrf.mxu0
        %v2031 = vadd.f32 %v1942, %v2030
        %v2032 = vpop.f32.mrf.mxu0
        %v2033 = vadd.f32 %v1944, %v2032
        %2034 = vmatmul.bf16.gmra.mxu0 %v1151
        %v2035 = vpop.f32.mrf.mxu0
        %v2036 = vadd.f32 %v1947, %v2035
        %v2037 = vpop.f32.mrf.mxu0
        %v2038 = vadd.f32 %v1949, %v2037
        %2039 = vmatmul.bf16.gmra.mxu0 %v1152
        %v2040 = vpop.f32.mrf.mxu0
        %v2041 = vadd.f32 %v1952, %v2040
        %v2042 = vpop.f32.mrf.mxu0
        %v2043 = vadd.f32 %v1954, %v2042
        %2044 = vmatmul.bf16.gmra.mxu0 %v1153
        %v2045 = vpop.f32.mrf.mxu0
        %v2046 = vadd.f32 %v1957, %v2045
        %v2047 = vpop.f32.mrf.mxu0
        %v2048 = vadd.f32 %v1959, %v2047
        %2049 = vmatmul.bf16.gmra.mxu0 %v1154
        %v2050 = vpop.f32.mrf.mxu0
        %v2051 = vadd.f32 %v1962, %v2050
        %v2052 = vpop.f32.mrf.mxu0
        %v2053 = vadd.f32 %v1964, %v2052
        %2054 = vmatmul.bf16.gmra.mxu0 %v1155
        %v2055 = vpop.f32.mrf.mxu0
        %v2056 = vadd.f32 %v1967, %v2055
        %v2057 = vpop.f32.mrf.mxu0
        %v2058 = vadd.f32 %v1969, %v2057
        %2059 = vmatmul.bf16.gmra.mxu0 %v1156
        %v2060 = vpop.f32.mrf.mxu0
        %v2061 = vadd.f32 %v1972, %v2060
        %v2062 = vpop.f32.mrf.mxu0
        %v2063 = vadd.f32 %v1974, %v2062
        %2064 = vmatmul.bf16.gmra.mxu0 %v1179
        %v2065 = vpop.f32.mrf.mxu0
        %v2066 = vadd.f32 %v1977, %v2065
        %v2067 = vpop.f32.mrf.mxu0
        %v2068 = vadd.f32 %v1979, %v2067
        %2069 = vdwg.mxu0
        %2070 = vmatpush.bf16.msra.mxu0 %v1722
        %2071 = vmatpush.bf16.msra.mxu0 %v1721
        %2072 = vmatpush.bf16.msra.mxu0 %v1720
        %2073 = vmatpush.bf16.msra.mxu0 %v1719
        %2074 = vmatpush.bf16.msra.mxu0 %v1718
        %2075 = vmatpush.bf16.msra.mxu0 %v1717
        %2076 = vmatpush.bf16.msra.mxu0 %v1716
        %2077 = vmatpush.bf16.msra.mxu0 %v1715
        %2078 = vmatmul.bf16.gmra.mxu0 %v1245
        %v2079 = vpop.f32.mrf.mxu0
        %v2080 = vadd.f32 %v1991, %v2079
        %v2081 = vpop.f32.mrf.mxu0
        %v2082 = vadd.f32 %v1993, %v2081
        %2083 = vmatmul.bf16.gmra.mxu0 %v1246
        %v2084 = vpop.f32.mrf.mxu0
        %v2085 = vadd.f32 %v1996, %v2084
        %v2086 = vpop.f32.mrf.mxu0
        %v2087 = vadd.f32 %v1998, %v2086
        %2088 = vmatmul.bf16.gmra.mxu0 %v1247
        %v2089 = vpop.f32.mrf.mxu0
        %v2090 = vadd.f32 %v2001, %v2089
        %v2091 = vpop.f32.mrf.mxu0
        %v2092 = vadd.f32 %v2003, %v2091
        %2093 = vmatmul.bf16.gmra.mxu0 %v1248
        %v2094 = vpop.f32.mrf.mxu0
        %v2095 = vadd.f32 %v2006, %v2094
        %v2096 = vpop.f32.mrf.mxu0
        %v2097 = vadd.f32 %v2008, %v2096
        %2098 = vmatmul.bf16.gmra.mxu0 %v1249
        %v2099 = vpop.f32.mrf.mxu0
        %v2100 = vadd.f32 %v2011, %v2099
        %v2101 = vpop.f32.mrf.mxu0
        %v2102 = vadd.f32 %v2013, %v2101
        %2103 = vmatmul.bf16.gmra.mxu0 %v1250
        %v2104 = vpop.f32.mrf.mxu0
        %v2105 = vadd.f32 %v2016, %v2104
        %v2106 = vpop.f32.mrf.mxu0
        %v2107 = vadd.f32 %v2018, %v2106
        %2108 = vmatmul.bf16.gmra.mxu0 %v1251
        %v2109 = vpop.f32.mrf.mxu0
        %v2110 = vadd.f32 %v2021, %v2109
        %v2111 = vpop.f32.mrf.mxu0
        %v2112 = vadd.f32 %v2023, %v2111
        %2113 = vmatmul.bf16.gmra.mxu0 %v1252
        %v2114 = vpop.f32.mrf.mxu0
        %v2115 = vadd.f32 %v2026, %v2114
        %v2116 = vpop.f32.mrf.mxu0
        %v2117 = vadd.f32 %v2028, %v2116
        %2118 = vmatmul.bf16.gmra.mxu0 %v1253
        %v2119 = vpop.f32.mrf.mxu0
        %v2120 = vadd.f32 %v2031, %v2119
        %v2121 = vpop.f32.mrf.mxu0
        %v2122 = vadd.f32 %v2033, %v2121
        %2123 = vmatmul.bf16.gmra.mxu0 %v1254
        %v2124 = vpop.f32.mrf.mxu0
        %v2125 = vadd.f32 %v2036, %v2124
        %v2126 = vpop.f32.mrf.mxu0
        %v2127 = vadd.f32 %v2038, %v2126
        %2128 = vmatmul.bf16.gmra.mxu0 %v1255
        %v2129 = vpop.f32.mrf.mxu0
        %v2130 = vadd.f32 %v2041, %v2129
        %v2131 = vpop.f32.mrf.mxu0
        %v2132 = vadd.f32 %v2043, %v2131
        %2133 = vmatmul.bf16.gmra.mxu0 %v1256
        %v2134 = vpop.f32.mrf.mxu0
        %v2135 = vadd.f32 %v2046, %v2134
        %v2136 = vpop.f32.mrf.mxu0
        %v2137 = vadd.f32 %v2048, %v2136
        %2138 = vmatmul.bf16.gmra.mxu0 %v1257
        %v2139 = vpop.f32.mrf.mxu0
        %v2140 = vadd.f32 %v2051, %v2139
        %v2141 = vpop.f32.mrf.mxu0
        %v2142 = vadd.f32 %v2053, %v2141
        %2143 = vmatmul.bf16.gmra.mxu0 %v1258
        %v2144 = vpop.f32.mrf.mxu0
        %v2145 = vadd.f32 %v2056, %v2144
        %v2146 = vpop.f32.mrf.mxu0
        %v2147 = vadd.f32 %v2058, %v2146
        %2148 = vmatmul.bf16.gmra.mxu0 %v1259
        %v2149 = vpop.f32.mrf.mxu0
        %v2150 = vadd.f32 %v2061, %v2149
        %v2151 = vpop.f32.mrf.mxu0
        %v2152 = vadd.f32 %v2063, %v2151
        %2153 = vmatmul.bf16.gmra.mxu0 %v1260
        %v2154 = vpop.f32.mrf.mxu0
        %v2155 = vadd.f32 %v2066, %v2154
        %v2156 = vpop.f32.mrf.mxu0
        %v2157 = vadd.f32 %v2068, %v2156
        %2158 = vdwg.mxu0
        %2159 = vmatpush.bf16.msra.mxu0 %v1730
        %2160 = vmatpush.bf16.msra.mxu0 %v1729
        %2161 = vmatpush.bf16.msra.mxu0 %v1728
        %2162 = vmatpush.bf16.msra.mxu0 %v1727
        %2163 = vmatpush.bf16.msra.mxu0 %v1726
        %2164 = vmatpush.bf16.msra.mxu0 %v1725
        %2165 = vmatpush.bf16.msra.mxu0 %v1724
        %2166 = vmatpush.bf16.msra.mxu0 %v1723
        %2167 = vmatmul.bf16.gmra.mxu0 %v1246
        %v2168 = vpop.f32.mrf.mxu0
        %v2169 = vadd.f32 %v2080, %v2168
        %v2170 = vpop.f32.mrf.mxu0
        %v2171 = vadd.f32 %v2082, %v2170
        %2172 = vmatmul.bf16.gmra.mxu0 %v1247
        %v2173 = vpop.f32.mrf.mxu0
        %v2174 = vadd.f32 %v2085, %v2173
        %v2175 = vpop.f32.mrf.mxu0
        %v2176 = vadd.f32 %v2087, %v2175
        %2177 = vmatmul.bf16.gmra.mxu0 %v1248
        %v2178 = vpop.f32.mrf.mxu0
        %v2179 = vadd.f32 %v2090, %v2178
        %v2180 = vpop.f32.mrf.mxu0
        %v2181 = vadd.f32 %v2092, %v2180
        %2182 = vmatmul.bf16.gmra.mxu0 %v1249
        %v2183 = vpop.f32.mrf.mxu0
        %v2184 = vadd.f32 %v2095, %v2183
        %v2185 = vpop.f32.mrf.mxu0
        %v2186 = vadd.f32 %v2097, %v2185
        %2187 = vmatmul.bf16.gmra.mxu0 %v1250
        %v2188 = vpop.f32.mrf.mxu0
        %v2189 = vadd.f32 %v2100, %v2188
        %v2190 = vpop.f32.mrf.mxu0
        %v2191 = vadd.f32 %v2102, %v2190
        %2192 = vmatmul.bf16.gmra.mxu0 %v1251
        %v2193 = vpop.f32.mrf.mxu0
        %v2194 = vadd.f32 %v2105, %v2193
        %v2195 = vpop.f32.mrf.mxu0
        %v2196 = vadd.f32 %v2107, %v2195
        %2197 = vmatmul.bf16.gmra.mxu0 %v1252
        %v2198 = vpop.f32.mrf.mxu0
        %v2199 = vadd.f32 %v2110, %v2198
        %v2200 = vpop.f32.mrf.mxu0
        %v2201 = vadd.f32 %v2112, %v2200
        %2202 = vmatmul.bf16.gmra.mxu0 %v1253
        %v2203 = vpop.f32.mrf.mxu0
        %v2204 = vadd.f32 %v2115, %v2203
        %v2205 = vpop.f32.mrf.mxu0
        %v2206 = vadd.f32 %v2117, %v2205
        %2207 = vmatmul.bf16.gmra.mxu0 %v1254
        %v2208 = vpop.f32.mrf.mxu0
        %v2209 = vadd.f32 %v2120, %v2208
        %v2210 = vpop.f32.mrf.mxu0
        %v2211 = vadd.f32 %v2122, %v2210
        %2212 = vmatmul.bf16.gmra.mxu0 %v1255
        %v2213 = vpop.f32.mrf.mxu0
        %v2214 = vadd.f32 %v2125, %v2213
        %v2215 = vpop.f32.mrf.mxu0
        %v2216 = vadd.f32 %v2127, %v2215
        %2217 = vmatmul.bf16.gmra.mxu0 %v1256
        %v2218 = vpop.f32.mrf.mxu0
        %v2219 = vadd.f32 %v2130, %v2218
        %v2220 = vpop.f32.mrf.mxu0
        %v2221 = vadd.f32 %v2132, %v2220
        %2222 = vmatmul.bf16.gmra.mxu0 %v1257
        %v2223 = vpop.f32.mrf.mxu0
        %v2224 = vadd.f32 %v2135, %v2223
        %v2225 = vpop.f32.mrf.mxu0
        %v2226 = vadd.f32 %v2137, %v2225
        %2227 = vmatmul.bf16.gmra.mxu0 %v1258
        %v2228 = vpop.f32.mrf.mxu0
        %v2229 = vadd.f32 %v2140, %v2228
        %v2230 = vpop.f32.mrf.mxu0
        %v2231 = vadd.f32 %v2142, %v2230
        %2232 = vmatmul.bf16.gmra.mxu0 %v1259
        %v2233 = vpop.f32.mrf.mxu0
        %v2234 = vadd.f32 %v2145, %v2233
        %v2235 = vpop.f32.mrf.mxu0
        %v2236 = vadd.f32 %v2147, %v2235
        %2237 = vmatmul.bf16.gmra.mxu0 %v1260
        %v2238 = vpop.f32.mrf.mxu0
        %v2239 = vadd.f32 %v2150, %v2238
        %v2240 = vpop.f32.mrf.mxu0
        %v2241 = vadd.f32 %v2152, %v2240
        %2242 = vmatmul.bf16.gmra.mxu0 %v1281
        %v2243 = vpop.f32.mrf.mxu0
        %v2244 = vadd.f32 %v2155, %v2243
        %v2245 = vpop.f32.mrf.mxu0
        %v2246 = vadd.f32 %v2157, %v2245
        %2247 = vdwg.mxu0
        %2248 = vmatpush.bf16.msra.mxu0 %v1738
        %2249 = vmatpush.bf16.msra.mxu0 %v1737
        %2250 = vmatpush.bf16.msra.mxu0 %v1736
        %2251 = vmatpush.bf16.msra.mxu0 %v1735
        %2252 = vmatpush.bf16.msra.mxu0 %v1734
        %2253 = vmatpush.bf16.msra.mxu0 %v1733
        %2254 = vmatpush.bf16.msra.mxu0 %v1732
        %2255 = vmatpush.bf16.msra.mxu0 %v1731
        %2256 = vmatmul.bf16.gmra.mxu0 %v1315
        %v2257 = vpop.f32.mrf.mxu0
        %v2258 = vadd.f32 %v2169, %v2257
        %v2259 = vpop.f32.mrf.mxu0
        %v2260 = vadd.f32 %v2171, %v2259
        %2261 = vmatmul.bf16.gmra.mxu0 %v1316
        %v2262 = vpop.f32.mrf.mxu0
        %v2263 = vadd.f32 %v2174, %v2262
        %v2264 = vpop.f32.mrf.mxu0
        %v2265 = vadd.f32 %v2176, %v2264
        %2266 = vmatmul.bf16.gmra.mxu0 %v1317
        %v2267 = vpop.f32.mrf.mxu0
        %v2268 = vadd.f32 %v2179, %v2267
        %v2269 = vpop.f32.mrf.mxu0
        %v2270 = vadd.f32 %v2181, %v2269
        %2271 = vmatmul.bf16.gmra.mxu0 %v1318
        %v2272 = vpop.f32.mrf.mxu0
        %v2273 = vadd.f32 %v2184, %v2272
        %v2274 = vpop.f32.mrf.mxu0
        %v2275 = vadd.f32 %v2186, %v2274
        %2276 = vmatmul.bf16.gmra.mxu0 %v1319
        %v2277 = vpop.f32.mrf.mxu0
        %v2278 = vadd.f32 %v2189, %v2277
        %v2279 = vpop.f32.mrf.mxu0
        %v2280 = vadd.f32 %v2191, %v2279
        %2281 = vmatmul.bf16.gmra.mxu0 %v1320
        %v2282 = vpop.f32.mrf.mxu0
        %v2283 = vadd.f32 %v2194, %v2282
        %v2284 = vpop.f32.mrf.mxu0
        %v2285 = vadd.f32 %v2196, %v2284
        %2286 = vmatmul.bf16.gmra.mxu0 %v1321
        %v2287 = vpop.f32.mrf.mxu0
        %v2288 = vadd.f32 %v2199, %v2287
        %v2289 = vpop.f32.mrf.mxu0
        %v2290 = vadd.f32 %v2201, %v2289
        %2291 = vmatmul.bf16.gmra.mxu0 %v1322
        %v2292 = vpop.f32.mrf.mxu0
        %v2293 = vadd.f32 %v2204, %v2292
        %v2294 = vpop.f32.mrf.mxu0
        %v2295 = vadd.f32 %v2206, %v2294
        %2296 = vmatmul.bf16.gmra.mxu0 %v1323
        %v2297 = vpop.f32.mrf.mxu0
        %v2298 = vadd.f32 %v2209, %v2297
        %v2299 = vpop.f32.mrf.mxu0
        %v2300 = vadd.f32 %v2211, %v2299
        %2301 = vmatmul.bf16.gmra.mxu0 %v1324
        %v2302 = vpop.f32.mrf.mxu0
        %v2303 = vadd.f32 %v2214, %v2302
        %v2304 = vpop.f32.mrf.mxu0
        %v2305 = vadd.f32 %v2216, %v2304
        %2306 = vmatmul.bf16.gmra.mxu0 %v1325
        %v2307 = vpop.f32.mrf.mxu0
        %v2308 = vadd.f32 %v2219, %v2307
        %v2309 = vpop.f32.mrf.mxu0
        %v2310 = vadd.f32 %v2221, %v2309
        %2311 = vmatmul.bf16.gmra.mxu0 %v1326
        %v2312 = vpop.f32.mrf.mxu0
        %v2313 = vadd.f32 %v2224, %v2312
        %v2314 = vpop.f32.mrf.mxu0
        %v2315 = vadd.f32 %v2226, %v2314
        %2316 = vmatmul.bf16.gmra.mxu0 %v1327
        %v2317 = vpop.f32.mrf.mxu0
        %v2318 = vadd.f32 %v2229, %v2317
        %v2319 = vpop.f32.mrf.mxu0
        %v2320 = vadd.f32 %v2231, %v2319
        %2321 = vmatmul.bf16.gmra.mxu0 %v1328
        %v2322 = vpop.f32.mrf.mxu0
        %v2323 = vadd.f32 %v2234, %v2322
        %v2324 = vpop.f32.mrf.mxu0
        %v2325 = vadd.f32 %v2236, %v2324
        %2326 = vmatmul.bf16.gmra.mxu0 %v1329
        %v2327 = vpop.f32.mrf.mxu0
        %v2328 = vadd.f32 %v2239, %v2327
        %v2329 = vpop.f32.mrf.mxu0
        %v2330 = vadd.f32 %v2241, %v2329
        %2331 = vmatmul.bf16.gmra.mxu0 %v1330
        %v2332 = vpop.f32.mrf.mxu0
        %v2333 = vadd.f32 %v2244, %v2332
        %v2334 = vpop.f32.mrf.mxu0
        %v2335 = vadd.f32 %v2246, %v2334
        %2336 = vdwg.mxu0
        %2337 = vmatpush.bf16.msra.mxu0 %v1746
        %2338 = vmatpush.bf16.msra.mxu0 %v1745
        %2339 = vmatpush.bf16.msra.mxu0 %v1744
        %2340 = vmatpush.bf16.msra.mxu0 %v1743
        %2341 = vmatpush.bf16.msra.mxu0 %v1742
        %2342 = vmatpush.bf16.msra.mxu0 %v1741
        %2343 = vmatpush.bf16.msra.mxu0 %v1740
        %2344 = vmatpush.bf16.msra.mxu0 %v1739
        %2345 = vmatmul.bf16.gmra.mxu0 %v1316
        %v2346 = vpop.f32.mrf.mxu0
        %v2347 = vadd.f32 %v2258, %v2346
        %v2348 = vpop.f32.mrf.mxu0
        %v2349 = vadd.f32 %v2260, %v2348
        %2350 = vmatmul.bf16.gmra.mxu0 %v1317
        %v2351 = vpop.f32.mrf.mxu0
        %v2352 = vadd.f32 %v2263, %v2351
        %v2353 = vpop.f32.mrf.mxu0
        %v2354 = vadd.f32 %v2265, %v2353
        %2355 = vmatmul.bf16.gmra.mxu0 %v1318
        %v2356 = vpop.f32.mrf.mxu0
        %v2357 = vadd.f32 %v2268, %v2356
        %v2358 = vpop.f32.mrf.mxu0
        %v2359 = vadd.f32 %v2270, %v2358
        %2360 = vmatmul.bf16.gmra.mxu0 %v1319
        %v2361 = vpop.f32.mrf.mxu0
        %v2362 = vadd.f32 %v2273, %v2361
        %v2363 = vpop.f32.mrf.mxu0
        %v2364 = vadd.f32 %v2275, %v2363
        %2365 = vmatmul.bf16.gmra.mxu0 %v1320
        %v2366 = vpop.f32.mrf.mxu0
        %v2367 = vadd.f32 %v2278, %v2366
        %v2368 = vpop.f32.mrf.mxu0
        %v2369 = vadd.f32 %v2280, %v2368
        %2370 = vmatmul.bf16.gmra.mxu0 %v1321
        %v2371 = vpop.f32.mrf.mxu0
        %v2372 = vadd.f32 %v2283, %v2371
        %v2373 = vpop.f32.mrf.mxu0
        %v2374 = vadd.f32 %v2285, %v2373
        %2375 = vmatmul.bf16.gmra.mxu0 %v1322
        %v2376 = vpop.f32.mrf.mxu0
        %v2377 = vadd.f32 %v2288, %v2376
        %v2378 = vpop.f32.mrf.mxu0
        %v2379 = vadd.f32 %v2290, %v2378
        %2380 = vmatmul.bf16.gmra.mxu0 %v1323
        %v2381 = vpop.f32.mrf.mxu0
        %v2382 = vadd.f32 %v2293, %v2381
        %v2383 = vpop.f32.mrf.mxu0
        %v2384 = vadd.f32 %v2295, %v2383
        %2385 = vmatmul.bf16.gmra.mxu0 %v1324
        %v2386 = vpop.f32.mrf.mxu0
        %v2387 = vadd.f32 %v2298, %v2386
        %v2388 = vpop.f32.mrf.mxu0
        %v2389 = vadd.f32 %v2300, %v2388
        %2390 = vmatmul.bf16.gmra.mxu0 %v1325
        %v2391 = vpop.f32.mrf.mxu0
        %v2392 = vadd.f32 %v2303, %v2391
        %v2393 = vpop.f32.mrf.mxu0
        %v2394 = vadd.f32 %v2305, %v2393
        %2395 = vmatmul.bf16.gmra.mxu0 %v1326
        %v2396 = vpop.f32.mrf.mxu0
        %v2397 = vadd.f32 %v2308, %v2396
        %v2398 = vpop.f32.mrf.mxu0
        %v2399 = vadd.f32 %v2310, %v2398
        %2400 = vmatmul.bf16.gmra.mxu0 %v1327
        %v2401 = vpop.f32.mrf.mxu0
        %v2402 = vadd.f32 %v2313, %v2401
        %v2403 = vpop.f32.mrf.mxu0
        %v2404 = vadd.f32 %v2315, %v2403
        %2405 = vmatmul.bf16.gmra.mxu0 %v1328
        %v2406 = vpop.f32.mrf.mxu0
        %v2407 = vadd.f32 %v2318, %v2406
        %v2408 = vpop.f32.mrf.mxu0
        %v2409 = vadd.f32 %v2320, %v2408
        %2410 = vmatmul.bf16.gmra.mxu0 %v1329
        %v2411 = vpop.f32.mrf.mxu0
        %v2412 = vadd.f32 %v2323, %v2411
        %v2413 = vpop.f32.mrf.mxu0
        %v2414 = vadd.f32 %v2325, %v2413
        %2415 = vmatmul.bf16.gmra.mxu0 %v1330
        %v2416 = vpop.f32.mrf.mxu0
        %v2417 = vadd.f32 %v2328, %v2416
        %v2418 = vpop.f32.mrf.mxu0
        %v2419 = vadd.f32 %v2330, %v2418
        %2420 = vmatmul.bf16.gmra.mxu0 %v1349
        %v2421 = vpop.f32.mrf.mxu0
        %v2422 = vadd.f32 %v2333, %v2421
        %v2423 = vpop.f32.mrf.mxu0
        %v2424 = vadd.f32 %v2335, %v2423
        %2425 = vdwg.mxu0
        %v2426 = vunpack.c.l.bf16 %v485
        %v2427 = vunpack.c.l.bf16 %v495
        %v2428 = vunpack.c.l.bf16 %v509
        %v2429 = vunpack.c.l.bf16 %v519
        %v2430 = vunpack.c.l.bf16 %v533
        %v2431 = vunpack.c.l.bf16 %v543
        %v2432 = vunpack.c.l.bf16 %v557
        %v2433 = vunpack.c.l.bf16 %v567
        %v2434 = vunpack.c.l.bf16 %v581
        %v2435 = vunpack.c.l.bf16 %v591
        %v2436 = vunpack.c.l.bf16 %v605
        %v2437 = vunpack.c.l.bf16 %v615
        %v2438 = vunpack.c.l.bf16 %v629
        %v2439 = vunpack.c.l.bf16 %v639
        %v2440 = vunpack.c.l.bf16 %v653
        %v2441 = vunpack.c.l.bf16 %v663
        %v2442 = vunpack.c.l.bf16 %v677
        %v2443 = vunpack.c.l.bf16 %v687
        %v2444 = vunpack.c.l.bf16 %v701
        %v2445 = vunpack.c.l.bf16 %v711
        %v2446 = vunpack.c.l.bf16 %v725
        %v2447 = vunpack.c.l.bf16 %v735
        %v2448 = vunpack.c.l.bf16 %v749
        %v2449 = vunpack.c.l.bf16 %v759
        %v2450 = vunpack.c.l.bf16 %v773
        %v2451 = vunpack.c.l.bf16 %v783
        %v2452 = vunpack.c.l.bf16 %v797
        %v2453 = vunpack.c.l.bf16 %v807
        %v2454 = vunpack.c.l.bf16 %v821
        %v2455 = vunpack.c.l.bf16 %v831
        %v2456 = vunpack.c.l.bf16 %v845
        %v2457 = vunpack.c.l.bf16 %v855
        %v2458 = vadd.f32 %v2347, %v2426
        %v2459 = vadd.f32 %v2349, %v2427
        %v2460 = vadd.f32 %v2352, %v2428
        %v2461 = vadd.f32 %v2354, %v2429
        %v2462 = vadd.f32 %v2357, %v2430
        %v2463 = vadd.f32 %v2359, %v2431
        %v2464 = vadd.f32 %v2362, %v2432
        %v2465 = vadd.f32 %v2364, %v2433
        %v2466 = vadd.f32 %v2367, %v2434
        %v2467 = vadd.f32 %v2369, %v2435
        %v2468 = vadd.f32 %v2372, %v2436
        %v2469 = vadd.f32 %v2374, %v2437
        %v2470 = vadd.f32 %v2377, %v2438
        %v2471 = vadd.f32 %v2379, %v2439
        %v2472 = vadd.f32 %v2382, %v2440
        %v2473 = vadd.f32 %v2384, %v2441
        %v2474 = vadd.f32 %v2387, %v2442
        %v2475 = vadd.f32 %v2389, %v2443
        %v2476 = vadd.f32 %v2392, %v2444
        %v2477 = vadd.f32 %v2394, %v2445
        %v2478 = vadd.f32 %v2397, %v2446
        %v2479 = vadd.f32 %v2399, %v2447
        %v2480 = vadd.f32 %v2402, %v2448
        %v2481 = vadd.f32 %v2404, %v2449
        %v2482 = vadd.f32 %v2407, %v2450
        %v2483 = vadd.f32 %v2409, %v2451
        %v2484 = vadd.f32 %v2412, %v2452
        %v2485 = vadd.f32 %v2414, %v2453
        %v2486 = vadd.f32 %v2417, %v2454
        %v2487 = vadd.f32 %v2419, %v2455
        %v2488 = vadd.f32 %v2422, %v2456
        %v2489 = vadd.f32 %v2424, %v2457
        %v2490 = vmax.f32 %v2458, 0.0
        %v2491 = vmax.f32 %v2459, 0.0
        %v2492 = vmax.f32 %v2460, 0.0
        %v2493 = vmax.f32 %v2461, 0.0
        %v2494 = vmax.f32 %v2462, 0.0
        %v2495 = vmax.f32 %v2463, 0.0
        %v2496 = vmax.f32 %v2464, 0.0
        %v2497 = vmax.f32 %v2465, 0.0
        %v2498 = vmax.f32 %v2466, 0.0
        %v2499 = vmax.f32 %v2467, 0.0
        %v2500 = vmax.f32 %v2468, 0.0
        %v2501 = vmax.f32 %v2469, 0.0
        %v2502 = vmax.f32 %v2470, 0.0
        %v2503 = vmax.f32 %v2471, 0.0
        %v2504 = vmax.f32 %v2472, 0.0
        %v2505 = vmax.f32 %v2473, 0.0
        %v2506 = vmax.f32 %v2474, 0.0
        %v2507 = vmax.f32 %v2475, 0.0
        %v2508 = vmax.f32 %v2476, 0.0
        %v2509 = vmax.f32 %v2477, 0.0
        %v2510 = vmax.f32 %v2478, 0.0
        %v2511 = vmax.f32 %v2479, 0.0
        %v2512 = vmax.f32 %v2480, 0.0
        %v2513 = vmax.f32 %v2481, 0.0
        %v2514 = vmax.f32 %v2482, 0.0
        %v2515 = vmax.f32 %v2483, 0.0
        %v2516 = vmax.f32 %v2484, 0.0
        %v2517 = vmax.f32 %v2485, 0.0
        %v2518 = vmax.f32 %v2486, 0.0
        %v2519 = vmax.f32 %v2487, 0.0
        %v2520 = vmax.f32 %v2488, 0.0
        %v2521 = vmax.f32 %v2489, 0.0
        %2522 = vst [vmem:[%s207] sm:$0xff] %v2490
        %2523 = vst [vmem:[%s207 + $0x8] sm:$0xff] %v2491
        %2524 = vst [vmem:[%s207 + $0x10] sm:$0xff] %v2492
        %2525 = vst [vmem:[%s207 + $0x18] sm:$0xff] %v2493
        %2526 = vst [vmem:[%s207 + $0x20] sm:$0xff] %v2494
        %2527 = vst [vmem:[%s207 + $0x28] sm:$0xff] %v2495
        %2528 = vst [vmem:[%s207 + $0x30] sm:$0xff] %v2496
        %2529 = vst [vmem:[%s207 + $0x38] sm:$0xff] %v2497
        %2530 = vst [vmem:[%s207 + $0x40] sm:$0xff] %v2498
        %2531 = vst [vmem:[%s207 + $0x48] sm:$0xff] %v2499
        %2532 = vst [vmem:[%s207 + $0x50] sm:$0xff] %v2500
        %2533 = vst [vmem:[%s207 + $0x58] sm:$0xff] %v2501
        %2534 = vst [vmem:[%s207 + $0x60] sm:$0xff] %v2502
        %2535 = vst [vmem:[%s207 + $0x68] sm:$0xff] %v2503
        %2536 = vst [vmem:[%s207 + $0x70] sm:$0xff] %v2504
        %2537 = vst [vmem:[%s207 + $0x78] sm:$0xff] %v2505
        %2538 = vst [vmem:[%s207 + $0x80] sm:$0xff] %v2506
        %2539 = vst [vmem:[%s207 + $0x88] sm:$0xff] %v2507
        %2540 = vst [vmem:[%s207 + $0x90] sm:$0xff] %v2508
        %2541 = vst [vmem:[%s207 + $0x98] sm:$0xff] %v2509
        %2542 = vst [vmem:[%s207 + $0xa0] sm:$0xff] %v2510
        %2543 = vst [vmem:[%s207 + $0xa8] sm:$0xff] %v2511
        %2544 = vst [vmem:[%s207 + $0xb0] sm:$0xff] %v2512
        %2545 = vst [vmem:[%s207 + $0xb8] sm:$0xff] %v2513
        %2546 = vst [vmem:[%s207 + $0xc0] sm:$0xff] %v2514
        %2547 = vst [vmem:[%s207 + $0xc8] sm:$0xff] %v2515
        %2548 = vst [vmem:[%s207 + $0xd0] sm:$0xff] %v2516
        %2549 = vst [vmem:[%s207 + $0xd8] sm:$0xff] %v2517
        %2550 = vst [vmem:[%s207 + $0xe0] sm:$0xff] %v2518
        %2551 = vst [vmem:[%s207 + $0xe8] sm:$0xff] %v2519
        %2552 = vst [vmem:[%s207 + $0xf0] sm:$0xff] %v2520
        %2553 = vst [vmem:[%s207 + $0xf8] sm:$0xff] %v2521
        %s2554 = sand.u32 %s97, 1
        %s2555 = scalar_lea.sflag [#allocation4], %s2554
        %s2556 = sand.u32 %s97, 1
        %s2557 = smul.addr %s2556, 256
        %s2558 = scalar_lea.vmem [#allocation7], %s2557
        // Predicated region
        $region41: #{tpu_custom_call.1} parent=31 // pred_check
          %p2559 = pneg %p107
        $region42: #{tpu_custom_call.1} parent=31 // pred_check_branch
          %2561 = sbr.rel (%p2559) target = $region44
        $region43: #{tpu_custom_call.1} parent=31 // pred_region
          %2563 = vsyncadd %s2555, 0
          %s2564 = smul.addr %s21, 32
          %s2565 = smul.addr %s2564, 8
          %s2566 = scalar_lea.hbm %s3, %s2565
          %s2567 = sshll.u32 %s2558, 4
          %s2568 = int_to_ptr.vmem [resolvable:$true] %s2567
          %s2569 = sshll.u32 %s2566, 4
          %s2570 = int_to_ptr.hbm [resolvable:$true] %s2569
          %2575 = dma.vmem_to_hbm [thread:$0]  %s2568, 4096, %s2570, %s2555, 128, 128, 8
        $region44: #{tpu_custom_call.1} parent=31 // pred_fallthru
          _
      $region32: #{tpu_custom_call.1} parent=5 // pred_fallthru
        _
      %p2576 = scmp.le.s32.totalorder 2, %s16
      // Predicated region
      $region45: #{tpu_custom_call.1} parent=5 // pred_check
        %p2577 = pneg %p2576
      $region46: #{tpu_custom_call.1} parent=5 // pred_check_branch
        %2579 = sbr.rel (%p2577) target = $region48
      $region47: #{tpu_custom_call.1} parent=5 // pred_region
        %s2580 = ssub.s32 %s16, 2
        // Predicated region
        $region49: #{tpu_custom_call.1} parent=47 // pred_check
          %p2581 = pneg %p113
        $region50: #{tpu_custom_call.1} parent=47 // pred_check_branch
          %2583 = sbr.rel (%p2581) target = $region52
        $region51: #{tpu_custom_call.1} parent=47 // pred_region
          %s2584 = sand.u32 %s98, 1
          %s2585 = scalar_lea.sflag [#allocation4], %s2584
          %s2586 = sand.u32 %s98, 1
          %s2587 = smul.addr %s2586, 256
          %s2588 = scalar_lea.vmem [#allocation7], %s2587
          %2590 = dma.done %s2585, 4096
        $region52: #{tpu_custom_call.1} parent=47 // pred_fallthru
          _
      $region48: #{tpu_custom_call.1} parent=5 // pred_fallthru
        _
    $region6: #{tpu_custom_call.1} parent=1 // loop_footer
      %s20 = sadd.s32 1, %s16
    $region7: #{tpu_custom_call.1} parent=1 // loop_footer_branch
      %15 = sbr.rel target = $region3
    $region8: #{tpu_custom_call.1} parent=1 // loop_exit
      _
    %2591 = vsyncpa [#allocation3], 1
    %s2592 = scalar_lea.sflag [#allocation3], 1
    %2593 = vsyncpa %s2592, 1
    %2594 = vsyncpa [#allocation6], 1
    %2595 = vsyncpa [#allocation4], 1
    %s2596 = scalar_lea.sflag [#allocation4], 1
    %2597 = vsyncpa %s2596, 1

</llo_original>
